<compile_context>
chip_gen: v6e
topology: v6e:2x2x1
jax: 0.10.0
libtpu: 0.0.40
codegen_flags: <defaults>
</compile_context>

<pallas_src>
import jax
import jax.numpy as jnp
from jax.experimental import pallas as pl
from jax.experimental.pallas import tpu as pltpu


# ----------------------------- fused kernel -------------------------------- #

def _make_double_conv_kernel(H, W):
    HW = H * W
    taps = [(dy, dx) for dy in (-1, 0, 1) for dx in (-1, 0, 1)]  # k = (dy+1)*3+(dx+1)

    def kernel(ids_ref, x_ref, w1_ref, b1_ref, w2_ref, b2_ref, o_ref):
        # ids_ref: (2, HW) int32   row ids / col ids of each flattened pixel
        # x_ref:   (1, Cin, HW)    input tile, NC(HW) layout (lane-dense)
        # w1_ref:  (9, Cout, Cin)  per-tap weights   b1_ref: (Cout, 1)
        # w2_ref:  (9, Cout, Cout)                   b2_ref: (Cout, 1)
        # o_ref:   (1, Cout, HW)
        ids = ids_ref[...]
        i_ids = ids[0:1, :]          # (1, HW) row index of pixel p
        j_ids = ids[1:2, :]          # (1, HW) col index of pixel p

        # Per-tap validity masks (same for both convs); None => no masking needed.
        masks = []
        for dy, dx in taps:
            conds = []
            if dy == -1:
                conds.append(i_ids >= 1)
            if dy == 1:
                conds.append(i_ids <= H - 2)
            if dx == -1:
                conds.append(j_ids >= 1)
            if dx == 1:
                conds.append(j_ids <= W - 2)
            m = None
            for c in conds:
                m = c if m is None else jnp.logical_and(m, c)
            masks.append(m)

        def conv3x3_relu(src, w_ref, b_ref):
            # src: (C, HW) f32;  w_ref: (9, Cout, C);  b_ref: (Cout, 1)
            cout = w_ref.shape[1]
            acc = jnp.zeros((cout, HW), jnp.float32)
            for k, (dy, dx) in enumerate(taps):
                s = dy * W + dx                       # flat-index shift of this tap
                if s == 0:
                    win = src
                else:
                    # win[p] = src[p + s]  (wrapped entries are masked out below)
                    win = pltpu.roll(src, shift=(-s) % HW, axis=1)
                if masks[k] is not None:
                    win = jnp.where(masks[k], win, 0.0)
                acc = acc + jnp.dot(w_ref[k], win,
                                    preferred_element_type=jnp.float32)
            return jnp.maximum(acc + b_ref[...], 0.0)   # bias + ReLU (f32 VPU)

        x = x_ref[0].astype(jnp.float32)                # (Cin, HW)
        y1 = conv3x3_relu(x, w1_ref, b1_ref)            # conv1 result stays on-chip
        y2 = conv3x3_relu(y1, w2_ref, b2_ref)           # (Cout, HW)
        o_ref[0] = y2.astype(o_ref.dtype)

    return kernel


# ------------------------------ prepacking ---------------------------------- #

def prepack_params(w1, b1, w2, b2, H, W):
    """One-time repack: OIHW weights -> (9, Cout, Cin); build pixel-id table."""
    Cout, Cin = w1.shape[0], w1.shape[1]
    # (Cout, Cin, kh, kw) -> (kh, kw, Cout, Cin) -> (9, Cout, Cin), k = kh*3 + kw
    w1k = jnp.transpose(w1, (2, 3, 0, 1)).reshape(9, Cout, Cin)
    w2k = jnp.transpose(w2, (2, 3, 0, 1)).reshape(9, Cout, Cout)
    b1k = b1.reshape(Cout, 1)
    b2k = b2.reshape(Cout, 1)
    row = jnp.repeat(jnp.arange(H, dtype=jnp.int32), W)      # i of flat pixel
    col = jnp.tile(jnp.arange(W, dtype=jnp.int32), H)        # j of flat pixel
    pix_ids = jnp.stack([row, col], axis=0)                  # (2, H*W)
    return w1k, b1k, w2k, b2k, pix_ids


# ------------------------------- wrapper ------------------------------------ #

def double_conv_forward(x_nchw, packed):
    """DoubleConv.forward; input/output in PyTorch NCHW (only free reshapes)."""
    w1k, b1k, w2k, b2k, pix_ids = packed
    N, Cin, H, W = x_nchw.shape
    Cout = w1k.shape[1]
    HW = H * W

    x3 = x_nchw.reshape(N, Cin, HW)                           # contiguous, free

    out3 = pl.pallas_call(
        _make_double_conv_kernel(H, W),
        out_shape=jax.ShapeDtypeStruct((N, Cout, HW), x_nchw.dtype),
        grid=(N,),
        in_specs=[
            pl.BlockSpec((2, HW), lambda n: (0, 0)),
            pl.BlockSpec((1, Cin, HW), lambda n: (n, 0, 0)),
            pl.BlockSpec((9, Cout, Cin), lambda n: (0, 0, 0)),
            pl.BlockSpec((Cout, 1), lambda n: (0, 0)),
            pl.BlockSpec((9, Cout, Cout), lambda n: (0, 0, 0)),
            pl.BlockSpec((Cout, 1), lambda n: (0, 0)),
        ],
        out_specs=pl.BlockSpec((1, Cout, HW), lambda n: (n, 0, 0)),
        compiler_params=pltpu.CompilerParams(
            dimension_semantics=("parallel",)),
    )(pix_ids, x3, w1k, b1k, w2k, b2k)

    return out3.reshape(N, Cout, H, W)                        # contiguous, free


# ------------------------- pure-JAX reference ------------------------------- #

def _ref_forward(x, w1, b1, w2, b2):
    def conv(x, w, b):
        y = jax.lax.conv_general_dilated(
            x, w, window_strides=(1, 1), padding="SAME",
            dimension_numbers=("NCHW", "OIHW", "NCHW"))
        return jax.nn.relu(y + b[None, :, None, None])
    return conv(conv(x, w1, b1), w2, b2)


# --------------------------------- main -------------------------------------- #

if __name__ == "__main__":
    N, Cin, Cout, H, W = 2, 4, 8, 16, 16

    key = jax.random.PRNGKey(0)
    kx, kw1, kb1, kw2, kb2 = jax.random.split(key, 5)

    x = jax.random.normal(kx, (N, Cin, H, W), dtype=jnp.float32)
    # shapes from nn.Conv2d(in, out, 3, padding=1)
    w1 = jax.random.normal(kw1, (Cout, Cin, 3, 3), dtype=jnp.float32) * 0.1
    b1 = jax.random.normal(kb1, (Cout,), dtype=jnp.float32) * 0.1
    w2 = jax.random.normal(kw2, (Cout, Cout, 3, 3), dtype=jnp.float32) * 0.1
    b2 = jax.random.normal(kb2, (Cout,), dtype=jnp.float32) * 0.1

    packed = prepack_params(w1, b1, w2, b2, H, W)   # prepacked once ("model init")

    out = double_conv_forward(x, packed)
    out = jax.block_until_ready(out)

    ref = _ref_forward(x, w1, b1, w2, b2)
    assert out.shape == (N, Cout, H, W), out.shape
    assert jnp.allclose(out, ref, atol=1e-4, rtol=1e-4), "mismatch vs reference"

    print("KERNEL_OK")
</pallas_src>

<mosaic_0001>
module attributes {stable_mosaic.version = 11 : i64} {
  func.func @kernel(%arg0: i32, %arg1: memref<2x256xi32, #tpu.memory_space<vmem>>, %arg2: memref<1x4x256xf32, #tpu.memory_space<vmem>>, %arg3: memref<9x8x4xf32, #tpu.memory_space<vmem>>, %arg4: memref<8x1xf32, #tpu.memory_space<vmem>>, %arg5: memref<9x8x8xf32, #tpu.memory_space<vmem>>, %arg6: memref<8x1xf32, #tpu.memory_space<vmem>>, %arg7: memref<1x8x256xf32, #tpu.memory_space<vmem>>) attributes {dimension_semantics = [#tpu.dimension_semantics<parallel>], iteration_bounds = array<i64: 2>, scalar_prefetch = 0 : i64, scratch_operands = 0 : i64, tpu.core_type = #tpu.core_type<tc>, window_params = [{pipeline_mode = #tpu.pipeline_mode<synchronous>, transform_indices = @transform_0, window_bounds = array<i64: 2, 256>}, {transform_indices = @transform_1, window_bounds = array<i64: 1, 4, 256>}, {pipeline_mode = #tpu.pipeline_mode<synchronous>, transform_indices = @transform_2, window_bounds = array<i64: 9, 8, 4>}, {pipeline_mode = #tpu.pipeline_mode<synchronous>, transform_indices = @transform_3, window_bounds = array<i64: 8, 1>}, {pipeline_mode = #tpu.pipeline_mode<synchronous>, transform_indices = @transform_4, window_bounds = array<i64: 9, 8, 8>}, {pipeline_mode = #tpu.pipeline_mode<synchronous>, transform_indices = @transform_5, window_bounds = array<i64: 8, 1>}, {transform_indices = @transform_6, window_bounds = array<i64: 1, 8, 256>}]} {
    %c0 = arith.constant 0 : index
    %c0_0 = arith.constant 0 : index
    %0 = vector.load %arg1[%c0, %c0_0] : memref<2x256xi32, #tpu.memory_space<vmem>>, vector<2x256xi32>
    %1 = vector.extract_strided_slice %0 {offsets = [0, 0], sizes = [1, 256], strides = [1, 1]} : vector<2x256xi32> to vector<1x256xi32>
    %2 = vector.extract_strided_slice %0 {offsets = [1, 0], sizes = [1, 256], strides = [1, 1]} : vector<2x256xi32> to vector<1x256xi32>
    %c1_i32 = arith.constant 1 : i32
    %3 = vector.broadcast %c1_i32 : i32 to vector<1x256xi32>
    %4 = arith.cmpi sge, %1, %3 : vector<1x256xi32>
    %c1_i32_1 = arith.constant 1 : i32
    %5 = vector.broadcast %c1_i32_1 : i32 to vector<1x256xi32>
    %6 = arith.cmpi sge, %2, %5 : vector<1x256xi32>
    %7 = arith.andi %4, %6 : vector<1x256xi1>
    %c1_i32_2 = arith.constant 1 : i32
    %8 = vector.broadcast %c1_i32_2 : i32 to vector<1x256xi32>
    %9 = arith.cmpi sge, %1, %8 : vector<1x256xi32>
    %c1_i32_3 = arith.constant 1 : i32
    %10 = vector.broadcast %c1_i32_3 : i32 to vector<1x256xi32>
    %11 = arith.cmpi sge, %1, %10 : vector<1x256xi32>
    %c14_i32 = arith.constant 14 : i32
    %12 = vector.broadcast %c14_i32 : i32 to vector<1x256xi32>
    %13 = arith.cmpi sle, %2, %12 : vector<1x256xi32>
    %14 = arith.andi %11, %13 : vector<1x256xi1>
    %c1_i32_4 = arith.constant 1 : i32
    %15 = vector.broadcast %c1_i32_4 : i32 to vector<1x256xi32>
    %16 = arith.cmpi sge, %2, %15 : vector<1x256xi32>
    %c14_i32_5 = arith.constant 14 : i32
    %17 = vector.broadcast %c14_i32_5 : i32 to vector<1x256xi32>
    %18 = arith.cmpi sle, %2, %17 : vector<1x256xi32>
    %c14_i32_6 = arith.constant 14 : i32
    %19 = vector.broadcast %c14_i32_6 : i32 to vector<1x256xi32>
    %20 = arith.cmpi sle, %1, %19 : vector<1x256xi32>
    %c1_i32_7 = arith.constant 1 : i32
    %21 = vector.broadcast %c1_i32_7 : i32 to vector<1x256xi32>
    %22 = arith.cmpi sge, %2, %21 : vector<1x256xi32>
    %23 = arith.andi %20, %22 : vector<1x256xi1>
    %c14_i32_8 = arith.constant 14 : i32
    %24 = vector.broadcast %c14_i32_8 : i32 to vector<1x256xi32>
    %25 = arith.cmpi sle, %1, %24 : vector<1x256xi32>
    %c14_i32_9 = arith.constant 14 : i32
    %26 = vector.broadcast %c14_i32_9 : i32 to vector<1x256xi32>
    %27 = arith.cmpi sle, %1, %26 : vector<1x256xi32>
    %c14_i32_10 = arith.constant 14 : i32
    %28 = vector.broadcast %c14_i32_10 : i32 to vector<1x256xi32>
    %29 = arith.cmpi sle, %2, %28 : vector<1x256xi32>
    %30 = arith.andi %27, %29 : vector<1x256xi1>
    %c0_11 = arith.constant 0 : index
    %c0_12 = arith.constant 0 : index
    %c0_13 = arith.constant 0 : index
    %31 = vector.load %arg2[%c0_11, %c0_12, %c0_13] : memref<1x4x256xf32, #tpu.memory_space<vmem>>, vector<1x4x256xf32>
    %32 = vector.shape_cast %31 : vector<1x4x256xf32> to vector<4x256xf32>
    %cst = arith.constant 0.000000e+00 : f32
    %33 = vector.broadcast %cst : f32 to vector<8x256xf32>
    %c17_i32 = arith.constant 17 : i32
    %34 = tpu.dynamic_rotate %32 by %c17_i32 dim 1 : vector<4x256xf32>, i32 -> vector<4x256xf32>
    %cst_14 = arith.constant 0.000000e+00 : f32
    %35 = vector.shape_cast %7 : vector<1x256xi1> to vector<1x256xi1>
    %36 = vector.broadcast %35 : vector<1x256xi1> to vector<4x256xi1>
    %37 = vector.broadcast %cst_14 : f32 to vector<4x256xf32>
    %38 = arith.select %36, %34, %37 : vector<4x256xi1>, vector<4x256xf32>
    %c0_15 = arith.constant 0 : index
    %c0_16 = arith.constant 0 : index
    %c0_17 = arith.constant 0 : index
    %39 = vector.load %arg3[%c0_15, %c0_16, %c0_17] : memref<9x8x4xf32, #tpu.memory_space<vmem>>, vector<1x8x4xf32>
    %40 = vector.shape_cast %39 : vector<1x8x4xf32> to vector<8x4xf32>
    %cst_18 = arith.constant dense<0.000000e+00> : vector<8x256xf32>
    %41 = tpu.matmul %40, %38, %cst_18 {dimension_numbers = #tpu.dot_dimension_numbers<[1], [0], [0], [1], [0, 0, 1, 1], [], []>} : vector<8x4xf32>, vector<4x256xf32>, vector<8x256xf32> -> vector<8x256xf32>
    %42 = arith.addf %33, %41 : vector<8x256xf32>
    %c16_i32 = arith.constant 16 : i32
    %43 = tpu.dynamic_rotate %32 by %c16_i32 dim 1 : vector<4x256xf32>, i32 -> vector<4x256xf32>
    %cst_19 = arith.constant 0.000000e+00 : f32
    %44 = vector.shape_cast %9 : vector<1x256xi1> to vector<1x256xi1>
    %45 = vector.broadcast %44 : vector<1x256xi1> to vector<4x256xi1>
    %46 = vector.broadcast %cst_19 : f32 to vector<4x256xf32>
    %47 = arith.select %45, %43, %46 : vector<4x256xi1>, vector<4x256xf32>
    %c1 = arith.constant 1 : index
    %c0_20 = arith.constant 0 : index
    %c0_21 = arith.constant 0 : index
    %48 = vector.load %arg3[%c1, %c0_20, %c0_21] : memref<9x8x4xf32, #tpu.memory_space<vmem>>, vector<1x8x4xf32>
    %49 = vector.shape_cast %48 : vector<1x8x4xf32> to vector<8x4xf32>
    %cst_22 = arith.constant dense<0.000000e+00> : vector<8x256xf32>
    %50 = tpu.matmul %49, %47, %cst_22 {dimension_numbers = #tpu.dot_dimension_numbers<[1], [0], [0], [1], [0, 0, 1, 1], [], []>} : vector<8x4xf32>, vector<4x256xf32>, vector<8x256xf32> -> vector<8x256xf32>
    %51 = arith.addf %42, %50 : vector<8x256xf32>
    %c15_i32 = arith.constant 15 : i32
    %52 = tpu.dynamic_rotate %32 by %c15_i32 dim 1 : vector<4x256xf32>, i32 -> vector<4x256xf32>
    %cst_23 = arith.constant 0.000000e+00 : f32
    %53 = vector.shape_cast %14 : vector<1x256xi1> to vector<1x256xi1>
    %54 = vector.broadcast %53 : vector<1x256xi1> to vector<4x256xi1>
    %55 = vector.broadcast %cst_23 : f32 to vector<4x256xf32>
    %56 = arith.select %54, %52, %55 : vector<4x256xi1>, vector<4x256xf32>
    %c2 = arith.constant 2 : index
    %c0_24 = arith.constant 0 : index
    %c0_25 = arith.constant 0 : index
    %57 = vector.load %arg3[%c2, %c0_24, %c0_25] : memref<9x8x4xf32, #tpu.memory_space<vmem>>, vector<1x8x4xf32>
    %58 = vector.shape_cast %57 : vector<1x8x4xf32> to vector<8x4xf32>
    %cst_26 = arith.constant dense<0.000000e+00> : vector<8x256xf32>
    %59 = tpu.matmul %58, %56, %cst_26 {dimension_numbers = #tpu.dot_dimension_numbers<[1], [0], [0], [1], [0, 0, 1, 1], [], []>} : vector<8x4xf32>, vector<4x256xf32>, vector<8x256xf32> -> vector<8x256xf32>
    %60 = arith.addf %51, %59 : vector<8x256xf32>
    %c1_i32_27 = arith.constant 1 : i32
    %61 = tpu.dynamic_rotate %32 by %c1_i32_27 dim 1 : vector<4x256xf32>, i32 -> vector<4x256xf32>
    %cst_28 = arith.constant 0.000000e+00 : f32
    %62 = vector.shape_cast %16 : vector<1x256xi1> to vector<1x256xi1>
    %63 = vector.broadcast %62 : vector<1x256xi1> to vector<4x256xi1>
    %64 = vector.broadcast %cst_28 : f32 to vector<4x256xf32>
    %65 = arith.select %63, %61, %64 : vector<4x256xi1>, vector<4x256xf32>
    %c3 = arith.constant 3 : index
    %c0_29 = arith.constant 0 : index
    %c0_30 = arith.constant 0 : index
    %66 = vector.load %arg3[%c3, %c0_29, %c0_30] : memref<9x8x4xf32, #tpu.memory_space<vmem>>, vector<1x8x4xf32>
    %67 = vector.shape_cast %66 : vector<1x8x4xf32> to vector<8x4xf32>
    %cst_31 = arith.constant dense<0.000000e+00> : vector<8x256xf32>
    %68 = tpu.matmul %67, %65, %cst_31 {dimension_numbers = #tpu.dot_dimension_numbers<[1], [0], [0], [1], [0, 0, 1, 1], [], []>} : vector<8x4xf32>, vector<4x256xf32>, vector<8x256xf32> -> vector<8x256xf32>
    %69 = arith.addf %60, %68 : vector<8x256xf32>
    %c4 = arith.constant 4 : index
    %c0_32 = arith.constant 0 : index
    %c0_33 = arith.constant 0 : index
    %70 = vector.load %arg3[%c4, %c0_32, %c0_33] : memref<9x8x4xf32, #tpu.memory_space<vmem>>, vector<1x8x4xf32>
    %71 = vector.shape_cast %70 : vector<1x8x4xf32> to vector<8x4xf32>
    %cst_34 = arith.constant dense<0.000000e+00> : vector<8x256xf32>
    %72 = tpu.matmul %71, %32, %cst_34 {dimension_numbers = #tpu.dot_dimension_numbers<[1], [0], [0], [1], [0, 0, 1, 1], [], []>} : vector<8x4xf32>, vector<4x256xf32>, vector<8x256xf32> -> vector<8x256xf32>
    %73 = arith.addf %69, %72 : vector<8x256xf32>
    %c255_i32 = arith.constant 255 : i32
    %74 = tpu.dynamic_rotate %32 by %c255_i32 dim 1 : vector<4x256xf32>, i32 -> vector<4x256xf32>
    %cst_35 = arith.constant 0.000000e+00 : f32
    %75 = vector.shape_cast %18 : vector<1x256xi1> to vector<1x256xi1>
    %76 = vector.broadcast %75 : vector<1x256xi1> to vector<4x256xi1>
    %77 = vector.broadcast %cst_35 : f32 to vector<4x256xf32>
    %78 = arith.select %76, %74, %77 : vector<4x256xi1>, vector<4x256xf32>
    %c5 = arith.constant 5 : index
    %c0_36 = arith.constant 0 : index
    %c0_37 = arith.constant 0 : index
    %79 = vector.load %arg3[%c5, %c0_36, %c0_37] : memref<9x8x4xf32, #tpu.memory_space<vmem>>, vector<1x8x4xf32>
    %80 = vector.shape_cast %79 : vector<1x8x4xf32> to vector<8x4xf32>
    %cst_38 = arith.constant dense<0.000000e+00> : vector<8x256xf32>
    %81 = tpu.matmul %80, %78, %cst_38 {dimension_numbers = #tpu.dot_dimension_numbers<[1], [0], [0], [1], [0, 0, 1, 1], [], []>} : vector<8x4xf32>, vector<4x256xf32>, vector<8x256xf32> -> vector<8x256xf32>
    %82 = arith.addf %73, %81 : vector<8x256xf32>
    %c241_i32 = arith.constant 241 : i32
    %83 = tpu.dynamic_rotate %32 by %c241_i32 dim 1 : vector<4x256xf32>, i32 -> vector<4x256xf32>
    %cst_39 = arith.constant 0.000000e+00 : f32
    %84 = vector.shape_cast %23 : vector<1x256xi1> to vector<1x256xi1>
    %85 = vector.broadcast %84 : vector<1x256xi1> to vector<4x256xi1>
    %86 = vector.broadcast %cst_39 : f32 to vector<4x256xf32>
    %87 = arith.select %85, %83, %86 : vector<4x256xi1>, vector<4x256xf32>
    %c6 = arith.constant 6 : index
    %c0_40 = arith.constant 0 : index
    %c0_41 = arith.constant 0 : index
    %88 = vector.load %arg3[%c6, %c0_40, %c0_41] : memref<9x8x4xf32, #tpu.memory_space<vmem>>, vector<1x8x4xf32>
    %89 = vector.shape_cast %88 : vector<1x8x4xf32> to vector<8x4xf32>
    %cst_42 = arith.constant dense<0.000000e+00> : vector<8x256xf32>
    %90 = tpu.matmul %89, %87, %cst_42 {dimension_numbers = #tpu.dot_dimension_numbers<[1], [0], [0], [1], [0, 0, 1, 1], [], []>} : vector<8x4xf32>, vector<4x256xf32>, vector<8x256xf32> -> vector<8x256xf32>
    %91 = arith.addf %82, %90 : vector<8x256xf32>
    %c240_i32 = arith.constant 240 : i32
    %92 = tpu.dynamic_rotate %32 by %c240_i32 dim 1 : vector<4x256xf32>, i32 -> vector<4x256xf32>
    %cst_43 = arith.constant 0.000000e+00 : f32
    %93 = vector.shape_cast %25 : vector<1x256xi1> to vector<1x256xi1>
    %94 = vector.broadcast %93 : vector<1x256xi1> to vector<4x256xi1>
    %95 = vector.broadcast %cst_43 : f32 to vector<4x256xf32>
    %96 = arith.select %94, %92, %95 : vector<4x256xi1>, vector<4x256xf32>
    %c7 = arith.constant 7 : index
    %c0_44 = arith.constant 0 : index
    %c0_45 = arith.constant 0 : index
    %97 = vector.load %arg3[%c7, %c0_44, %c0_45] : memref<9x8x4xf32, #tpu.memory_space<vmem>>, vector<1x8x4xf32>
    %98 = vector.shape_cast %97 : vector<1x8x4xf32> to vector<8x4xf32>
    %cst_46 = arith.constant dense<0.000000e+00> : vector<8x256xf32>
    %99 = tpu.matmul %98, %96, %cst_46 {dimension_numbers = #tpu.dot_dimension_numbers<[1], [0], [0], [1], [0, 0, 1, 1], [], []>} : vector<8x4xf32>, vector<4x256xf32>, vector<8x256xf32> -> vector<8x256xf32>
    %100 = arith.addf %91, %99 : vector<8x256xf32>
    %c239_i32 = arith.constant 239 : i32
    %101 = tpu.dynamic_rotate %32 by %c239_i32 dim 1 : vector<4x256xf32>, i32 -> vector<4x256xf32>
    %cst_47 = arith.constant 0.000000e+00 : f32
    %102 = vector.shape_cast %30 : vector<1x256xi1> to vector<1x256xi1>
    %103 = vector.broadcast %102 : vector<1x256xi1> to vector<4x256xi1>
    %104 = vector.broadcast %cst_47 : f32 to vector<4x256xf32>
    %105 = arith.select %103, %101, %104 : vector<4x256xi1>, vector<4x256xf32>
    %c8 = arith.constant 8 : index
    %c0_48 = arith.constant 0 : index
    %c0_49 = arith.constant 0 : index
    %106 = vector.load %arg3[%c8, %c0_48, %c0_49] : memref<9x8x4xf32, #tpu.memory_space<vmem>>, vector<1x8x4xf32>
    %107 = vector.shape_cast %106 : vector<1x8x4xf32> to vector<8x4xf32>
    %cst_50 = arith.constant dense<0.000000e+00> : vector<8x256xf32>
    %108 = tpu.matmul %107, %105, %cst_50 {dimension_numbers = #tpu.dot_dimension_numbers<[1], [0], [0], [1], [0, 0, 1, 1], [], []>} : vector<8x4xf32>, vector<4x256xf32>, vector<8x256xf32> -> vector<8x256xf32>
    %109 = arith.addf %100, %108 : vector<8x256xf32>
    %c0_51 = arith.constant 0 : index
    %c0_52 = arith.constant 0 : index
    %110 = vector.load %arg4[%c0_51, %c0_52] : memref<8x1xf32, #tpu.memory_space<vmem>>, vector<8x1xf32>
    %111 = vector.broadcast %110 : vector<8x1xf32> to vector<8x256xf32>
    %112 = arith.addf %109, %111 : vector<8x256xf32>
    %cst_53 = arith.constant 0.000000e+00 : f32
    %113 = vector.broadcast %cst_53 : f32 to vector<8x256xf32>
    %114 = arith.maximumf %112, %113 : vector<8x256xf32>
    %cst_54 = arith.constant 0.000000e+00 : f32
    %115 = vector.broadcast %cst_54 : f32 to vector<8x256xf32>
    %c17_i32_55 = arith.constant 17 : i32
    %116 = tpu.dynamic_rotate %114 by %c17_i32_55 dim 1 : vector<8x256xf32>, i32 -> vector<8x256xf32>
    %cst_56 = arith.constant 0.000000e+00 : f32
    %117 = vector.shape_cast %7 : vector<1x256xi1> to vector<1x256xi1>
    %118 = vector.broadcast %117 : vector<1x256xi1> to vector<8x256xi1>
    %119 = vector.broadcast %cst_56 : f32 to vector<8x256xf32>
    %120 = arith.select %118, %116, %119 : vector<8x256xi1>, vector<8x256xf32>
    %c0_57 = arith.constant 0 : index
    %c0_58 = arith.constant 0 : index
    %c0_59 = arith.constant 0 : index
    %121 = vector.load %arg5[%c0_57, %c0_58, %c0_59] : memref<9x8x8xf32, #tpu.memory_space<vmem>>, vector<1x8x8xf32>
    %122 = vector.shape_cast %121 : vector<1x8x8xf32> to vector<8x8xf32>
    %cst_60 = arith.constant dense<0.000000e+00> : vector<8x256xf32>
    %123 = tpu.matmul %122, %120, %cst_60 {dimension_numbers = #tpu.dot_dimension_numbers<[1], [0], [0], [1], [0, 0, 1, 1], [], []>} : vector<8x8xf32>, vector<8x256xf32>, vector<8x256xf32> -> vector<8x256xf32>
    %124 = arith.addf %115, %123 : vector<8x256xf32>
    %c16_i32_61 = arith.constant 16 : i32
    %125 = tpu.dynamic_rotate %114 by %c16_i32_61 dim 1 : vector<8x256xf32>, i32 -> vector<8x256xf32>
    %cst_62 = arith.constant 0.000000e+00 : f32
    %126 = vector.shape_cast %9 : vector<1x256xi1> to vector<1x256xi1>
    %127 = vector.broadcast %126 : vector<1x256xi1> to vector<8x256xi1>
    %128 = vector.broadcast %cst_62 : f32 to vector<8x256xf32>
    %129 = arith.select %127, %125, %128 : vector<8x256xi1>, vector<8x256xf32>
    %c1_63 = arith.constant 1 : index
    %c0_64 = arith.constant 0 : index
    %c0_65 = arith.constant 0 : index
    %130 = vector.load %arg5[%c1_63, %c0_64, %c0_65] : memref<9x8x8xf32, #tpu.memory_space<vmem>>, vector<1x8x8xf32>
    %131 = vector.shape_cast %130 : vector<1x8x8xf32> to vector<8x8xf32>
    %cst_66 = arith.constant dense<0.000000e+00> : vector<8x256xf32>
    %132 = tpu.matmul %131, %129, %cst_66 {dimension_numbers = #tpu.dot_dimension_numbers<[1], [0], [0], [1], [0, 0, 1, 1], [], []>} : vector<8x8xf32>, vector<8x256xf32>, vector<8x256xf32> -> vector<8x256xf32>
    %133 = arith.addf %124, %132 : vector<8x256xf32>
    %c15_i32_67 = arith.constant 15 : i32
    %134 = tpu.dynamic_rotate %114 by %c15_i32_67 dim 1 : vector<8x256xf32>, i32 -> vector<8x256xf32>
    %cst_68 = arith.constant 0.000000e+00 : f32
    %135 = vector.shape_cast %14 : vector<1x256xi1> to vector<1x256xi1>
    %136 = vector.broadcast %135 : vector<1x256xi1> to vector<8x256xi1>
    %137 = vector.broadcast %cst_68 : f32 to vector<8x256xf32>
    %138 = arith.select %136, %134, %137 : vector<8x256xi1>, vector<8x256xf32>
    %c2_69 = arith.constant 2 : index
    %c0_70 = arith.constant 0 : index
    %c0_71 = arith.constant 0 : index
    %139 = vector.load %arg5[%c2_69, %c0_70, %c0_71] : memref<9x8x8xf32, #tpu.memory_space<vmem>>, vector<1x8x8xf32>
    %140 = vector.shape_cast %139 : vector<1x8x8xf32> to vector<8x8xf32>
    %cst_72 = arith.constant dense<0.000000e+00> : vector<8x256xf32>
    %141 = tpu.matmul %140, %138, %cst_72 {dimension_numbers = #tpu.dot_dimension_numbers<[1], [0], [0], [1], [0, 0, 1, 1], [], []>} : vector<8x8xf32>, vector<8x256xf32>, vector<8x256xf32> -> vector<8x256xf32>
    %142 = arith.addf %133, %141 : vector<8x256xf32>
    %c1_i32_73 = arith.constant 1 : i32
    %143 = tpu.dynamic_rotate %114 by %c1_i32_73 dim 1 : vector<8x256xf32>, i32 -> vector<8x256xf32>
    %cst_74 = arith.constant 0.000000e+00 : f32
    %144 = vector.shape_cast %16 : vector<1x256xi1> to vector<1x256xi1>
    %145 = vector.broadcast %144 : vector<1x256xi1> to vector<8x256xi1>
    %146 = vector.broadcast %cst_74 : f32 to vector<8x256xf32>
    %147 = arith.select %145, %143, %146 : vector<8x256xi1>, vector<8x256xf32>
    %c3_75 = arith.constant 3 : index
    %c0_76 = arith.constant 0 : index
    %c0_77 = arith.constant 0 : index
    %148 = vector.load %arg5[%c3_75, %c0_76, %c0_77] : memref<9x8x8xf32, #tpu.memory_space<vmem>>, vector<1x8x8xf32>
    %149 = vector.shape_cast %148 : vector<1x8x8xf32> to vector<8x8xf32>
    %cst_78 = arith.constant dense<0.000000e+00> : vector<8x256xf32>
    %150 = tpu.matmul %149, %147, %cst_78 {dimension_numbers = #tpu.dot_dimension_numbers<[1], [0], [0], [1], [0, 0, 1, 1], [], []>} : vector<8x8xf32>, vector<8x256xf32>, vector<8x256xf32> -> vector<8x256xf32>
    %151 = arith.addf %142, %150 : vector<8x256xf32>
    %c4_79 = arith.constant 4 : index
    %c0_80 = arith.constant 0 : index
    %c0_81 = arith.constant 0 : index
    %152 = vector.load %arg5[%c4_79, %c0_80, %c0_81] : memref<9x8x8xf32, #tpu.memory_space<vmem>>, vector<1x8x8xf32>
    %153 = vector.shape_cast %152 : vector<1x8x8xf32> to vector<8x8xf32>
    %cst_82 = arith.constant dense<0.000000e+00> : vector<8x256xf32>
    %154 = tpu.matmul %153, %114, %cst_82 {dimension_numbers = #tpu.dot_dimension_numbers<[1], [0], [0], [1], [0, 0, 1, 1], [], []>} : vector<8x8xf32>, vector<8x256xf32>, vector<8x256xf32> -> vector<8x256xf32>
    %155 = arith.addf %151, %154 : vector<8x256xf32>
    %c255_i32_83 = arith.constant 255 : i32
    %156 = tpu.dynamic_rotate %114 by %c255_i32_83 dim 1 : vector<8x256xf32>, i32 -> vector<8x256xf32>
    %cst_84 = arith.constant 0.000000e+00 : f32
    %157 = vector.shape_cast %18 : vector<1x256xi1> to vector<1x256xi1>
    %158 = vector.broadcast %157 : vector<1x256xi1> to vector<8x256xi1>
    %159 = vector.broadcast %cst_84 : f32 to vector<8x256xf32>
    %160 = arith.select %158, %156, %159 : vector<8x256xi1>, vector<8x256xf32>
    %c5_85 = arith.constant 5 : index
    %c0_86 = arith.constant 0 : index
    %c0_87 = arith.constant 0 : index
    %161 = vector.load %arg5[%c5_85, %c0_86, %c0_87] : memref<9x8x8xf32, #tpu.memory_space<vmem>>, vector<1x8x8xf32>
    %162 = vector.shape_cast %161 : vector<1x8x8xf32> to vector<8x8xf32>
    %cst_88 = arith.constant dense<0.000000e+00> : vector<8x256xf32>
    %163 = tpu.matmul %162, %160, %cst_88 {dimension_numbers = #tpu.dot_dimension_numbers<[1], [0], [0], [1], [0, 0, 1, 1], [], []>} : vector<8x8xf32>, vector<8x256xf32>, vector<8x256xf32> -> vector<8x256xf32>
    %164 = arith.addf %155, %163 : vector<8x256xf32>
    %c241_i32_89 = arith.constant 241 : i32
    %165 = tpu.dynamic_rotate %114 by %c241_i32_89 dim 1 : vector<8x256xf32>, i32 -> vector<8x256xf32>
    %cst_90 = arith.constant 0.000000e+00 : f32
    %166 = vector.shape_cast %23 : vector<1x256xi1> to vector<1x256xi1>
    %167 = vector.broadcast %166 : vector<1x256xi1> to vector<8x256xi1>
    %168 = vector.broadcast %cst_90 : f32 to vector<8x256xf32>
    %169 = arith.select %167, %165, %168 : vector<8x256xi1>, vector<8x256xf32>
    %c6_91 = arith.constant 6 : index
    %c0_92 = arith.constant 0 : index
    %c0_93 = arith.constant 0 : index
    %170 = vector.load %arg5[%c6_91, %c0_92, %c0_93] : memref<9x8x8xf32, #tpu.memory_space<vmem>>, vector<1x8x8xf32>
    %171 = vector.shape_cast %170 : vector<1x8x8xf32> to vector<8x8xf32>
    %cst_94 = arith.constant dense<0.000000e+00> : vector<8x256xf32>
    %172 = tpu.matmul %171, %169, %cst_94 {dimension_numbers = #tpu.dot_dimension_numbers<[1], [0], [0], [1], [0, 0, 1, 1], [], []>} : vector<8x8xf32>, vector<8x256xf32>, vector<8x256xf32> -> vector<8x256xf32>
    %173 = arith.addf %164, %172 : vector<8x256xf32>
    %c240_i32_95 = arith.constant 240 : i32
    %174 = tpu.dynamic_rotate %114 by %c240_i32_95 dim 1 : vector<8x256xf32>, i32 -> vector<8x256xf32>
    %cst_96 = arith.constant 0.000000e+00 : f32
    %175 = vector.shape_cast %25 : vector<1x256xi1> to vector<1x256xi1>
    %176 = vector.broadcast %175 : vector<1x256xi1> to vector<8x256xi1>
    %177 = vector.broadcast %cst_96 : f32 to vector<8x256xf32>
    %178 = arith.select %176, %174, %177 : vector<8x256xi1>, vector<8x256xf32>
    %c7_97 = arith.constant 7 : index
    %c0_98 = arith.constant 0 : index
    %c0_99 = arith.constant 0 : index
    %179 = vector.load %arg5[%c7_97, %c0_98, %c0_99] : memref<9x8x8xf32, #tpu.memory_space<vmem>>, vector<1x8x8xf32>
    %180 = vector.shape_cast %179 : vector<1x8x8xf32> to vector<8x8xf32>
    %cst_100 = arith.constant dense<0.000000e+00> : vector<8x256xf32>
    %181 = tpu.matmul %180, %178, %cst_100 {dimension_numbers = #tpu.dot_dimension_numbers<[1], [0], [0], [1], [0, 0, 1, 1], [], []>} : vector<8x8xf32>, vector<8x256xf32>, vector<8x256xf32> -> vector<8x256xf32>
    %182 = arith.addf %173, %181 : vector<8x256xf32>
    %c239_i32_101 = arith.constant 239 : i32
    %183 = tpu.dynamic_rotate %114 by %c239_i32_101 dim 1 : vector<8x256xf32>, i32 -> vector<8x256xf32>
    %cst_102 = arith.constant 0.000000e+00 : f32
    %184 = vector.shape_cast %30 : vector<1x256xi1> to vector<1x256xi1>
    %185 = vector.broadcast %184 : vector<1x256xi1> to vector<8x256xi1>
    %186 = vector.broadcast %cst_102 : f32 to vector<8x256xf32>
    %187 = arith.select %185, %183, %186 : vector<8x256xi1>, vector<8x256xf32>
    %c8_103 = arith.constant 8 : index
    %c0_104 = arith.constant 0 : index
    %c0_105 = arith.constant 0 : index
    %188 = vector.load %arg5[%c8_103, %c0_104, %c0_105] : memref<9x8x8xf32, #tpu.memory_space<vmem>>, vector<1x8x8xf32>
    %189 = vector.shape_cast %188 : vector<1x8x8xf32> to vector<8x8xf32>
    %cst_106 = arith.constant dense<0.000000e+00> : vector<8x256xf32>
    %190 = tpu.matmul %189, %187, %cst_106 {dimension_numbers = #tpu.dot_dimension_numbers<[1], [0], [0], [1], [0, 0, 1, 1], [], []>} : vector<8x8xf32>, vector<8x256xf32>, vector<8x256xf32> -> vector<8x256xf32>
    %191 = arith.addf %182, %190 : vector<8x256xf32>
    %c0_107 = arith.constant 0 : index
    %c0_108 = arith.constant 0 : index
    %192 = vector.load %arg6[%c0_107, %c0_108] : memref<8x1xf32, #tpu.memory_space<vmem>>, vector<8x1xf32>
    %193 = vector.broadcast %192 : vector<8x1xf32> to vector<8x256xf32>
    %194 = arith.addf %191, %193 : vector<8x256xf32>
    %cst_109 = arith.constant 0.000000e+00 : f32
    %195 = vector.broadcast %cst_109 : f32 to vector<8x256xf32>
    %196 = arith.maximumf %194, %195 : vector<8x256xf32>
    %c0_110 = arith.constant 0 : index
    %c0_111 = arith.constant 0 : index
    %c0_112 = arith.constant 0 : index
    %197 = vector.load %arg7[%c0_110, %c0_111, %c0_112] : memref<1x8x256xf32, #tpu.memory_space<vmem>>, vector<1x8x256xf32>
    %198 = vector.shape_cast %197 : vector<1x8x256xf32> to vector<8x256xf32>
    %199 = vector.shape_cast %196 : vector<8x256xf32> to vector<1x8x256xf32>
    tpu.vector_store %arg7[%c0_110, %c0_111, %c0_112], %199 {strides = array<i32>} : memref<1x8x256xf32, #tpu.memory_space<vmem>>, vector<1x8x256xf32>,
    return
  }
  func.func @transform_0(%arg0: i32) -> (i32, i32) {
    %c0_i32 = arith.constant 0 : i32
    %c0_i32_0 = arith.constant 0 : i32
    %c0_i32_1 = arith.constant 0 : i32
    return %c0_i32, %c0_i32_0 : i32, i32
  }
  func.func @transform_1(%arg0: i32) -> (i32, i32, i32) {
    %c0_i32 = arith.constant 0 : i32
    %c0_i32_0 = arith.constant 0 : i32
    %c0_i32_1 = arith.constant 0 : i32
    return %arg0, %c0_i32, %c0_i32_0 : i32, i32, i32
  }
  func.func @transform_2(%arg0: i32) -> (i32, i32, i32) {
    %c0_i32 = arith.constant 0 : i32
    %c0_i32_0 = arith.constant 0 : i32
    %c0_i32_1 = arith.constant 0 : i32
    %c0_i32_2 = arith.constant 0 : i32
    return %c0_i32, %c0_i32_0, %c0_i32_1 : i32, i32, i32
  }
  func.func @transform_3(%arg0: i32) -> (i32, i32) {
    %c0_i32 = arith.constant 0 : i32
    %c0_i32_0 = arith.constant 0 : i32
    %c0_i32_1 = arith.constant 0 : i32
    return %c0_i32, %c0_i32_0 : i32, i32
  }
  func.func @transform_4(%arg0: i32) -> (i32, i32, i32) {
    %c0_i32 = arith.constant 0 : i32
    %c0_i32_0 = arith.constant 0 : i32
    %c0_i32_1 = arith.constant 0 : i32
    %c0_i32_2 = arith.constant 0 : i32
    return %c0_i32, %c0_i32_0, %c0_i32_1 : i32, i32, i32
  }
  func.func @transform_5(%arg0: i32) -> (i32, i32) {
    %c0_i32 = arith.constant 0 : i32
    %c0_i32_0 = arith.constant 0 : i32
    %c0_i32_1 = arith.constant 0 : i32
    return %c0_i32, %c0_i32_0 : i32, i32
  }
  func.func @transform_6(%arg0: i32) -> (i32, i32, i32) {
    %c0_i32 = arith.constant 0 : i32
    %c0_i32_0 = arith.constant 0 : i32
    %c0_i32_1 = arith.constant 0 : i32
    return %arg0, %c0_i32, %c0_i32_0 : i32, i32, i32
  }
}

</mosaic_0001>

<llo_original>
// kernel: tpu_custom_call.1
$region0: #{tpu_custom_call.1}
  #allocation0 [shape = 'u32[]', space=smem, size = 0x4, offset = 0x4, fixed_abs, tag = 'smem constant byte address 0x4 - core index']
  #allocation1 [shape = 'u32[144,128]{1,0:T(1,128)}', space=vmem, size = 0x12000, scoped, tag = 'internal scratch']
  %s0 = inlined_call_operand.vmem [shape: s32[2,256], index: 0, kind: input, shape index: {}]
  %s1 = inlined_call_operand.vmem [shape: f32[2,4,256], index: 1, kind: input, shape index: {}]
  %s2 = inlined_call_operand.vmem [shape: f32[9,8,4], index: 2, kind: input, shape index: {}]
  %s3 = inlined_call_operand.vmem [shape: f32[8,1], index: 3, kind: input, shape index: {}]
  %s4 = inlined_call_operand.vmem [shape: f32[9,8,8], index: 4, kind: input, shape index: {}]
  %s5 = inlined_call_operand.vmem [shape: f32[8,1], index: 5, kind: input, shape index: {}]
  %s6 = inlined_call_operand.hbm [shape: f32[2,8,256], index: 6, kind: output, shape index: {}]
  %s7 = sld [smem:[#allocation0]]
  $region57: #{tpu_custom_call.1} parent=0
    _
  %s9 = ssub.s32 1, %s7
  %s10 = scalar_select 0, %s9, %s7
  $region1: #{tpu_custom_call.1} parent=0
    #allocation2 [shape = 'u8[16384]{0}', space=vmem, size = 0x4000, scoped, tag = 'output window, operand 0']
    #allocation3 [shape = 's32[2]{0}', space=sflag, size = 0x8, scoped, tag = 'scoped memory for tpu_custom_call.1']
    %11 = vsyncpa [#allocation3], 0
    %s12 = scalar_lea.sflag [#allocation3], 1
    %13 = vsyncpa %s12, 0
    loop: start=0, step=1, limit=4
    $region2: #{tpu_custom_call.1} parent=1 // loop_pre_header
      _
    $region3: #{tpu_custom_call.1} parent=1 // loop_header
      %s15 = sphi 0, %s19
      %p16 = scmp.ge.s32.totalorder %s15, 4
      %s23 = sphi 0, %s23
      %s25 = sphi 0, %s23
      %s26 = sphi 0, %s25
      %s40 = sphi 0, %s26
      %s46 = sphi 0, %s48
      %s49 = sphi 0, %s46
      %s50 = sphi 0, %s49
      %s66 = sphi 0, %s50
      %s70 = sphi 0, %s70
      %s72 = sphi 0, %s70
      %s73 = sphi 0, %s72
      %s87 = sphi 0, %s73
      %s91 = sphi 0, %s91
      %s93 = sphi 0, %s91
      %s94 = sphi 0, %s93
      %s108 = sphi 0, %s94
      %s112 = sphi 0, %s112
      %s114 = sphi 0, %s112
      %s115 = sphi 0, %s114
      %s129 = sphi 0, %s115
      %s133 = sphi 0, %s133
      %s135 = sphi 0, %s133
      %s136 = sphi 0, %s135
      %s150 = sphi 0, %s136
      %s156 = sphi 0, %s158
      %s159 = sphi 0, %s156
      %s160 = sphi 0, %s159
      %s176 = sphi 0, %s160
    $region4: #{tpu_custom_call.1} parent=1 // loop_header_branch
      %18 = sbr.rel (%p16) target = $region8
    $region5: #{tpu_custom_call.1} parent=1 // loop_body
      %s20 = ssub.s32 %s15, 1
      %s21 = ssub.s32 %s15, 2
      %s22 = sadd.s32 %s15, 1
      %s24 = sadd.s32 %s23, 1
      %p27 = scmp.eq.s32.totalorder %s15, 1
      %p28 = scmp.ne.s32.totalorder %s23, %s25
      %p29 = scmp.eq.s32.totalorder %s15, 0
      %p30 = por %p28, %p29
      %p31 = scmp.ne.s32.totalorder %s23, %s25
      %p32 = scmp.eq.s32.totalorder %s20, 1
      %p33 = por %p31, %p32
      %p34 = scmp.ne.s32.totalorder %s25, %s26
      %p35 = scmp.eq.s32.totalorder %s20, 0
      %p36 = por %p34, %p35
      %p37 = scmp.ne.s32.totalorder %s25, %s26
      %p38 = scmp.eq.s32.totalorder %s21, 1
      %p39 = por %p37, %p38
      %p41 = scmp.ne.s32.totalorder %s26, %s40
      %p42 = scmp.eq.s32.totalorder %s21, 0
      %p43 = por %p41, %p42
      %s44 = ssub.s32 %s15, %s22
      %p45 = scmp.eq.s32.totalorder %s44, 0
      %s47 = sadd.s32 %s46, 1
      %s48 = scalar_select %p45, %s46, %s47
      %p51 = pneg %p45
      %p52 = scmp.eq.s32.totalorder %s15, 1
      %p53 = por %p51, %p52
      %p54 = scmp.ne.s32.totalorder %s46, %s49
      %p55 = scmp.eq.s32.totalorder %s15, 0
      %p56 = por %p54, %p55
      %p57 = scmp.ne.s32.totalorder %s46, %s49
      %p58 = scmp.eq.s32.totalorder %s20, 1
      %p59 = por %p57, %p58
      %p60 = scmp.ne.s32.totalorder %s49, %s50
      %p61 = scmp.eq.s32.totalorder %s20, 0
      %p62 = por %p60, %p61
      %p63 = scmp.ne.s32.totalorder %s49, %s50
      %p64 = scmp.eq.s32.totalorder %s21, 1
      %p65 = por %p63, %p64
      %p67 = scmp.ne.s32.totalorder %s50, %s66
      %p68 = scmp.eq.s32.totalorder %s21, 0
      %p69 = por %p67, %p68
      %s71 = sadd.s32 %s70, 1
      %p74 = scmp.eq.s32.totalorder %s15, 1
      %p75 = scmp.ne.s32.totalorder %s70, %s72
      %p76 = scmp.eq.s32.totalorder %s15, 0
      %p77 = por %p75, %p76
      %p78 = scmp.ne.s32.totalorder %s70, %s72
      %p79 = scmp.eq.s32.totalorder %s20, 1
      %p80 = por %p78, %p79
      %p81 = scmp.ne.s32.totalorder %s72, %s73
      %p82 = scmp.eq.s32.totalorder %s20, 0
      %p83 = por %p81, %p82
      %p84 = scmp.ne.s32.totalorder %s72, %s73
      %p85 = scmp.eq.s32.totalorder %s21, 1
      %p86 = por %p84, %p85
      %p88 = scmp.ne.s32.totalorder %s73, %s87
      %p89 = scmp.eq.s32.totalorder %s21, 0
      %p90 = por %p88, %p89
      %s92 = sadd.s32 %s91, 1
      %p95 = scmp.eq.s32.totalorder %s15, 1
      %p96 = scmp.ne.s32.totalorder %s91, %s93
      %p97 = scmp.eq.s32.totalorder %s15, 0
      %p98 = por %p96, %p97
      %p99 = scmp.ne.s32.totalorder %s91, %s93
      %p100 = scmp.eq.s32.totalorder %s20, 1
      %p101 = por %p99, %p100
      %p102 = scmp.ne.s32.totalorder %s93, %s94
      %p103 = scmp.eq.s32.totalorder %s20, 0
      %p104 = por %p102, %p103
      %p105 = scmp.ne.s32.totalorder %s93, %s94
      %p106 = scmp.eq.s32.totalorder %s21, 1
      %p107 = por %p105, %p106
      %p109 = scmp.ne.s32.totalorder %s94, %s108
      %p110 = scmp.eq.s32.totalorder %s21, 0
      %p111 = por %p109, %p110
      %s113 = sadd.s32 %s112, 1
      %p116 = scmp.eq.s32.totalorder %s15, 1
      %p117 = scmp.ne.s32.totalorder %s112, %s114
      %p118 = scmp.eq.s32.totalorder %s15, 0
      %p119 = por %p117, %p118
      %p120 = scmp.ne.s32.totalorder %s112, %s114
      %p121 = scmp.eq.s32.totalorder %s20, 1
      %p122 = por %p120, %p121
      %p123 = scmp.ne.s32.totalorder %s114, %s115
      %p124 = scmp.eq.s32.totalorder %s20, 0
      %p125 = por %p123, %p124
      %p126 = scmp.ne.s32.totalorder %s114, %s115
      %p127 = scmp.eq.s32.totalorder %s21, 1
      %p128 = por %p126, %p127
      %p130 = scmp.ne.s32.totalorder %s115, %s129
      %p131 = scmp.eq.s32.totalorder %s21, 0
      %p132 = por %p130, %p131
      %s134 = sadd.s32 %s133, 1
      %p137 = scmp.eq.s32.totalorder %s15, 1
      %p138 = scmp.ne.s32.totalorder %s133, %s135
      %p139 = scmp.eq.s32.totalorder %s15, 0
      %p140 = por %p138, %p139
      %p141 = scmp.ne.s32.totalorder %s133, %s135
      %p142 = scmp.eq.s32.totalorder %s20, 1
      %p143 = por %p141, %p142
      %p144 = scmp.ne.s32.totalorder %s135, %s136
      %p145 = scmp.eq.s32.totalorder %s20, 0
      %p146 = por %p144, %p145
      %p147 = scmp.ne.s32.totalorder %s135, %s136
      %p148 = scmp.eq.s32.totalorder %s21, 1
      %p149 = por %p147, %p148
      %p151 = scmp.ne.s32.totalorder %s136, %s150
      %p152 = scmp.eq.s32.totalorder %s21, 0
      %p153 = por %p151, %p152
      %s154 = ssub.s32 %s15, %s22
      %p155 = scmp.eq.s32.totalorder %s154, 0
      %s157 = sadd.s32 %s156, 1
      %s158 = scalar_select %p155, %s156, %s157
      %p161 = pneg %p155
      %p162 = scmp.eq.s32.totalorder %s15, 1
      %p163 = por %p161, %p162
      %p164 = scmp.ne.s32.totalorder %s156, %s159
      %p165 = scmp.eq.s32.totalorder %s15, 0
      %p166 = por %p164, %p165
      %p167 = scmp.ne.s32.totalorder %s156, %s159
      %p168 = scmp.eq.s32.totalorder %s20, 1
      %p169 = por %p167, %p168
      %p170 = scmp.ne.s32.totalorder %s159, %s160
      %p171 = scmp.eq.s32.totalorder %s20, 0
      %p172 = por %p170, %p171
      %p173 = scmp.ne.s32.totalorder %s159, %s160
      %p174 = scmp.eq.s32.totalorder %s21, 1
      %p175 = por %p173, %p174
      %p177 = scmp.ne.s32.totalorder %s160, %s176
      %p178 = scmp.eq.s32.totalorder %s21, 0
      %p179 = por %p177, %p178
      %p180 = scmp.le.s32.totalorder 1, %s15
      %p181 = scmp.lt.s32.totalorder %s15, 3
      %p182 = pnand %p180, %p181
      %p183 = pneg %p182
      // Predicated region
      $region9: #{tpu_custom_call.1} parent=5 // pred_check
        _
      $region10: #{tpu_custom_call.1} parent=5 // pred_check_branch
        %185 = sbr.rel (%p182) target = $region12
      $region11: #{tpu_custom_call.1} parent=5 // pred_region
        %s186 = ssub.s32 %s15, 1
        // Predicated region
        $region13: #{tpu_custom_call.1} parent=11 // pred_check
          %p187 = pneg %p36
        $region14: #{tpu_custom_call.1} parent=11 // pred_check_branch
          %189 = sbr.rel (%p187) target = $region16
        $region15: #{tpu_custom_call.1} parent=11 // pred_region
          _
        $region16: #{tpu_custom_call.1} parent=11 // pred_fallthru
          _
        // Predicated region
        $region17: #{tpu_custom_call.1} parent=11 // pred_check
          %p190 = pneg %p83
        $region18: #{tpu_custom_call.1} parent=11 // pred_check_branch
          %192 = sbr.rel (%p190) target = $region20
        $region19: #{tpu_custom_call.1} parent=11 // pred_region
          _
        $region20: #{tpu_custom_call.1} parent=11 // pred_fallthru
          _
        // Predicated region
        $region21: #{tpu_custom_call.1} parent=11 // pred_check
          %p193 = pneg %p104
        $region22: #{tpu_custom_call.1} parent=11 // pred_check_branch
          %195 = sbr.rel (%p193) target = $region24
        $region23: #{tpu_custom_call.1} parent=11 // pred_region
          _
        $region24: #{tpu_custom_call.1} parent=11 // pred_fallthru
          _
        // Predicated region
        $region25: #{tpu_custom_call.1} parent=11 // pred_check
          %p196 = pneg %p125
        $region26: #{tpu_custom_call.1} parent=11 // pred_check_branch
          %198 = sbr.rel (%p196) target = $region28
        $region27: #{tpu_custom_call.1} parent=11 // pred_region
          _
        $region28: #{tpu_custom_call.1} parent=11 // pred_fallthru
          _
        // Predicated region
        $region29: #{tpu_custom_call.1} parent=11 // pred_check
          %p199 = pneg %p146
        $region30: #{tpu_custom_call.1} parent=11 // pred_check_branch
          %201 = sbr.rel (%p199) target = $region32
        $region31: #{tpu_custom_call.1} parent=11 // pred_region
          _
        $region32: #{tpu_custom_call.1} parent=11 // pred_fallthru
          _
      $region12: #{tpu_custom_call.1} parent=5 // pred_fallthru
        _
      %p202 = scmp.lt.s32.totalorder %s15, 2
      // Predicated region
      $region33: #{tpu_custom_call.1} parent=5 // pred_check
        %p203 = pneg %p202
      $region34: #{tpu_custom_call.1} parent=5 // pred_check_branch
        %205 = sbr.rel (%p203) target = $region36
      $region35: #{tpu_custom_call.1} parent=5 // pred_region
        // Predicated region
        $region37: #{tpu_custom_call.1} parent=35 // pred_check
          %p206 = pneg %p56
        $region38: #{tpu_custom_call.1} parent=35 // pred_check_branch
          %208 = sbr.rel (%p206) target = $region40
        $region39: #{tpu_custom_call.1} parent=35 // pred_region
          %p209 = scmp.lt.s32.totalorder %s15, 1
          %s210 = scalar_select %p209, %s15, 1
          %s211 = smul.addr %s210, 2
          %s212 = smul.addr %s211, 4
          %s213 = scalar_lea.vmem %s1, %s212
        $region40: #{tpu_custom_call.1} parent=35 // pred_fallthru
          _
      $region36: #{tpu_custom_call.1} parent=5 // pred_fallthru
        _
      %p214 = scmp.le.s32.totalorder 1, %s15
      %p215 = scmp.lt.s32.totalorder %s15, 3
      %p216 = pnand %p214, %p215
      %p217 = pneg %p216
      // Predicated region
      $region41: #{tpu_custom_call.1} parent=5 // pred_check
        _
      $region42: #{tpu_custom_call.1} parent=5 // pred_check_branch
        %219 = sbr.rel (%p216) target = $region44
      $region43: #{tpu_custom_call.1} parent=5 // pred_region
        %s220 = ssub.s32 %s15, 1
        %p221 = pneg %p36
        %p222 = pneg %p33
        %p223 = scmp.lt.s32.totalorder %s20, 1
        %s224 = scalar_select %p223, %s20, 1
        %s225 = smul.addr %s224, 2
        %s226 = smul.addr %s225, 4
        %s227 = scalar_lea.vmem %s1, %s226
        %p228 = pneg %p62
        %p229 = pneg %p59
        %p230 = pneg %p83
        %p231 = pneg %p80
        %p232 = pneg %p104
        %p233 = pneg %p101
        %p234 = pneg %p125
        %p235 = pneg %p122
        %p236 = pneg %p146
        %p237 = pneg %p143
        %p238 = pneg %p172
        %p239 = pneg %p169
        %s240 = sand.u32 %s159, 1
        %s241 = scalar_lea.sflag [#allocation3], %s240
        %s242 = sand.u32 %s159, 1
        %s243 = smul.addr %s242, 16
        %s244 = scalar_lea.vmem [#allocation2], %s243
        %p245 = scmp.lt.s32.totalorder %s20, 1
        %s246 = scalar_select %p245, %s20, 1
        %s247 = smul.addr %s246, 2
        %s248 = smul.addr %s247, 4
        %s249 = scalar_lea.vmem %s1, %s248
        %v250 = vld [vmem:[%s0] sm:$0xf]
        %vm251 = vcmp.ge.s32.totalorder %v250, 1
        %v252 = vsel %vm251, 1, 0
        %v253 = vrot.slane %v252, 7
        %v254 = vrot.slane %v253, 2
        %vm255 = vcmp.ne.s32.totalorder %v254, 0
        %vm256 = vmand %vm251, %vm255
        %vm257 = vcmp.le.s32.totalorder %v250, 14
        %v258 = vsel %vm257, 1, 0
        %v259 = vrot.slane %v258, 7
        %v260 = vrot.slane %v259, 2
        %vm261 = vcmp.ne.s32.totalorder %v260, 0
        %vm262 = vmand %vm251, %vm261
        %vm263 = vmand %vm257, %vm255
        %vm264 = vmand %vm257, %vm261
        %v265 = vld [vmem:[%s249] sm:$0xff]
        %v267 = vcombine.high %v265, %v265
        %269 = vrot.lane.b32.xlu0 %v265, 17
        %v270 = vpop.permute.xlu0 %269
        %271 = vrot.lane.b32.xlu0 %v267, 17
        %v272 = vpop.permute.xlu0 %271
        %v273 = vlaneseq
        %v274 = vand.u32 %v273, 127
        %vm275 = vcmp.lt.s32.totalorder %v274, 17
        %v276 = vsel %vm275, %v270, %v272
        %v277 = vsel %vm275, %v272, %v270
        %v278 = vsel %vm256, 1, 0
        %v279 = vlaneseq
        %v280 = vshrl.u32 %v279, 7
        %v281 = vsub.s32 0, %v280
        %v282 = vrot.slane %v278, %v281
        %v283 = vlaneseq
        %v284 = vshrl.u32 %v283, 7
        %v285 = vsub.s32 2, %v284
        %v286 = vrot.slane %v278, %v285
        %v287 = vlaneseq
        %v288 = vshrl.u32 %v287, 7
        %v289 = vsub.s32 0, %v288
        %v290 = vrot.slane %v282, %v289
        %v291 = vlaneseq
        %v292 = vshrl.u32 %v291, 7
        %v293 = vsub.s32 0, %v292
        %v294 = vrot.slane %v286, %v293
        %vm295 = vcmp.eq.s32.totalorder %v290, 1
        %vm296 = vcmp.eq.s32.totalorder %v294, 1
        %v297 = vsel %vm295, %v277, 0.0
        %v298 = vsel %vm296, %v276, 0.0
        %v299 = vld [vmem:[%s2] sm:$0xff]
        %300 = vrot.lane.b32.xlu0 %v265, 16
        %v301 = vpop.permute.xlu0 %300
        %302 = vrot.lane.b32.xlu0 %v267, 16
        %v303 = vpop.permute.xlu0 %302
        %vm304 = vcmp.lt.s32.totalorder %v274, 16
        %v305 = vsel %vm304, %v301, %v303
        %v306 = vsel %vm304, %v303, %v301
        %v307 = vlaneseq
        %v308 = vshrl.u32 %v307, 7
        %v309 = vsub.s32 0, %v308
        %v310 = vrot.slane %v252, %v309
        %v311 = vlaneseq
        %v312 = vshrl.u32 %v311, 7
        %v313 = vsub.s32 2, %v312
        %v314 = vrot.slane %v252, %v313
        %v315 = vlaneseq
        %v316 = vshrl.u32 %v315, 7
        %v317 = vsub.s32 0, %v316
        %v318 = vrot.slane %v310, %v317
        %v319 = vlaneseq
        %v320 = vshrl.u32 %v319, 7
        %v321 = vsub.s32 0, %v320
        %v322 = vrot.slane %v314, %v321
        %vm323 = vcmp.eq.s32.totalorder %v318, 1
        %vm324 = vcmp.eq.s32.totalorder %v322, 1
        %v325 = vsel %vm323, %v306, 0.0
        %v326 = vsel %vm324, %v305, 0.0
        %s327 = scalar_lea.vmem %s2, 8
        %v328 = vld [vmem:[%s327] sm:$0xff]
        %vm329 = vcmask 31744
        %v331 = vsel %vm329, %v328, 0
        %vm333 = vcmask 1043456
        %v335 = vsel %vm333, %v325, 0
        %v338 = vsel %vm333, %v326, 0
        %340 = vmatprep.subr.mxu0 0.0
        %341 = vmatpush1.msra.mxu0 0.0
        %342 = vmatprep.subr.mxu0 0.0
        %343 = vmatpush1.msra.mxu0 0.0
        %344 = vmatprep.subr.mxu0 0.0
        %345 = vmatpush1.msra.mxu0 0.0
        %346 = vmatprep.subr.mxu0 0.0
        %347 = vmatpush1.msra.mxu0 0.0
        %348 = vmatprep.subr.mxu0 0.0
        %349 = vmatpush1.msra.mxu0 0.0
        %350 = vmatprep.subr.mxu0 0.0
        %351 = vmatpush1.msra.mxu0 0.0
        %352 = vmatprep.subr.mxu0 0.0
        %353 = vmatpush1.msra.mxu0 0.0
        %354 = vmatprep.subr.mxu0 0.0
        %355 = vmatpush1.msra.mxu0 0.0
        %356 = vmatprep.subr.mxu0 0.0
        %357 = vmatpush1.msra.mxu0 0.0
        %358 = vmatprep.subr.mxu0 0.0
        %359 = vmatpush1.msra.mxu0 0.0
        %360 = vmatprep.subr.mxu0 0.0
        %361 = vmatpush1.msra.mxu0 0.0
        %362 = vmatprep.subr.mxu0 0.0
        %363 = vmatpush1.msra.mxu0 0.0
        %364 = vmatprep.subr.mxu0 0.0
        %365 = vmatpush1.msra.mxu0 0.0
        %366 = vmatprep.subr.mxu0 0.0
        %367 = vmatpush1.msra.mxu0 0.0
        %368 = vmatprep.subr.mxu0 0.0
        %369 = vmatpush1.msra.mxu0 0.0
        %370 = vmatprep.subr.mxu0 %v338
        %371 = vmatpush1.msra.mxu0 %v335
        %372 = vmatprep.subr.mxu0 0.0
        %373 = vmatpush2.msra.mxu0 0.0
        %374 = vmatprep.subr.mxu0 0.0
        %375 = vmatpush2.msra.mxu0 0.0
        %376 = vmatprep.subr.mxu0 0.0
        %377 = vmatpush2.msra.mxu0 0.0
        %378 = vmatprep.subr.mxu0 0.0
        %379 = vmatpush2.msra.mxu0 0.0
        %380 = vmatprep.subr.mxu0 0.0
        %381 = vmatpush2.msra.mxu0 0.0
        %382 = vmatprep.subr.mxu0 0.0
        %383 = vmatpush2.msra.mxu0 0.0
        %384 = vmatprep.subr.mxu0 0.0
        %385 = vmatpush2.msra.mxu0 0.0
        %386 = vmatprep.subr.mxu0 0.0
        %387 = vmatpush2.msra.mxu0 0.0
        %388 = vmatprep.subr.mxu0 0.0
        %389 = vmatpush2.msra.mxu0 0.0
        %390 = vmatprep.subr.mxu0 0.0
        %391 = vmatpush2.msra.mxu0 0.0
        %392 = vmatprep.subr.mxu0 0.0
        %393 = vmatpush2.msra.mxu0 0.0
        %394 = vmatprep.subr.mxu0 0.0
        %395 = vmatpush2.msra.mxu0 0.0
        %396 = vmatprep.subr.mxu0 0.0
        %397 = vmatpush2.msra.mxu0 0.0
        %398 = vmatprep.subr.mxu0 0.0
        %399 = vmatpush2.msra.mxu0 0.0
        %400 = vmatprep.subr.mxu0 0.0
        %401 = vmatpush2.msra.mxu0 0.0
        %402 = vmatprep.subr.mxu0 0.0
        %403 = vmatpush2.msra.mxu0 0.0
        %404 = vmatprep.mubr.f32.mxu0 0.0
        %405 = vmatmul.mubr.f32.gmra.mxu0 %v331
        %v406 = vpop.f32.mrf.mxu0
        %v407 = vadd.f32 0.0, %v406
        %v408 = vpop.f32.mrf.mxu0
        %v409 = vadd.f32 0.0, %v408
        %410 = vdwg.mxu0
        %v412 = vsel %vm329, %v299, 0
        %v415 = vsel %vm333, %v297, 0
        %v418 = vsel %vm333, %v298, 0
        %420 = vmatprep.subr.mxu0 0.0
        %421 = vmatpush1.msra.mxu0 0.0
        %422 = vmatprep.subr.mxu0 0.0
        %423 = vmatpush1.msra.mxu0 0.0
        %424 = vmatprep.subr.mxu0 0.0
        %425 = vmatpush1.msra.mxu0 0.0
        %426 = vmatprep.subr.mxu0 0.0
        %427 = vmatpush1.msra.mxu0 0.0
        %428 = vmatprep.subr.mxu0 0.0
        %429 = vmatpush1.msra.mxu0 0.0
        %430 = vmatprep.subr.mxu0 0.0
        %431 = vmatpush1.msra.mxu0 0.0
        %432 = vmatprep.subr.mxu0 0.0
        %433 = vmatpush1.msra.mxu0 0.0
        %434 = vmatprep.subr.mxu0 0.0
        %435 = vmatpush1.msra.mxu0 0.0
        %436 = vmatprep.subr.mxu0 0.0
        %437 = vmatpush1.msra.mxu0 0.0
        %438 = vmatprep.subr.mxu0 0.0
        %439 = vmatpush1.msra.mxu0 0.0
        %440 = vmatprep.subr.mxu0 0.0
        %441 = vmatpush1.msra.mxu0 0.0
        %442 = vmatprep.subr.mxu0 0.0
        %443 = vmatpush1.msra.mxu0 0.0
        %444 = vmatprep.subr.mxu0 0.0
        %445 = vmatpush1.msra.mxu0 0.0
        %446 = vmatprep.subr.mxu0 0.0
        %447 = vmatpush1.msra.mxu0 0.0
        %448 = vmatprep.subr.mxu0 0.0
        %449 = vmatpush1.msra.mxu0 0.0
        %450 = vmatprep.subr.mxu0 %v418
        %451 = vmatpush1.msra.mxu0 %v415
        %452 = vmatprep.subr.mxu0 0.0
        %453 = vmatpush2.msra.mxu0 0.0
        %454 = vmatprep.subr.mxu0 0.0
        %455 = vmatpush2.msra.mxu0 0.0
        %456 = vmatprep.subr.mxu0 0.0
        %457 = vmatpush2.msra.mxu0 0.0
        %458 = vmatprep.subr.mxu0 0.0
        %459 = vmatpush2.msra.mxu0 0.0
        %460 = vmatprep.subr.mxu0 0.0
        %461 = vmatpush2.msra.mxu0 0.0
        %462 = vmatprep.subr.mxu0 0.0
        %463 = vmatpush2.msra.mxu0 0.0
        %464 = vmatprep.subr.mxu0 0.0
        %465 = vmatpush2.msra.mxu0 0.0
        %466 = vmatprep.subr.mxu0 0.0
        %467 = vmatpush2.msra.mxu0 0.0
        %468 = vmatprep.subr.mxu0 0.0
        %469 = vmatpush2.msra.mxu0 0.0
        %470 = vmatprep.subr.mxu0 0.0
        %471 = vmatpush2.msra.mxu0 0.0
        %472 = vmatprep.subr.mxu0 0.0
        %473 = vmatpush2.msra.mxu0 0.0
        %474 = vmatprep.subr.mxu0 0.0
        %475 = vmatpush2.msra.mxu0 0.0
        %476 = vmatprep.subr.mxu0 0.0
        %477 = vmatpush2.msra.mxu0 0.0
        %478 = vmatprep.subr.mxu0 0.0
        %479 = vmatpush2.msra.mxu0 0.0
        %480 = vmatprep.subr.mxu0 0.0
        %481 = vmatpush2.msra.mxu0 0.0
        %482 = vmatprep.subr.mxu0 0.0
        %483 = vmatpush2.msra.mxu0 0.0
        %484 = vmatprep.mubr.f32.mxu0 0.0
        %485 = vmatmul.mubr.f32.gmra.mxu0 %v412
        %v486 = vpop.f32.mrf.mxu0
        %v487 = vadd.f32 %v407, %v486
        %v488 = vpop.f32.mrf.mxu0
        %v489 = vadd.f32 %v409, %v488
        %490 = vdwg.mxu0
        %491 = vrot.lane.b32.xlu0 %v265, 15
        %v492 = vpop.permute.xlu0 %491
        %493 = vrot.lane.b32.xlu0 %v267, 15
        %v494 = vpop.permute.xlu0 %493
        %vm495 = vcmp.lt.s32.totalorder %v274, 15
        %v496 = vsel %vm495, %v492, %v494
        %v497 = vsel %vm495, %v494, %v492
        %v498 = vsel %vm262, 1, 0
        %v499 = vlaneseq
        %v500 = vshrl.u32 %v499, 7
        %v501 = vsub.s32 0, %v500
        %v502 = vrot.slane %v498, %v501
        %v503 = vlaneseq
        %v504 = vshrl.u32 %v503, 7
        %v505 = vsub.s32 2, %v504
        %v506 = vrot.slane %v498, %v505
        %v507 = vlaneseq
        %v508 = vshrl.u32 %v507, 7
        %v509 = vsub.s32 0, %v508
        %v510 = vrot.slane %v502, %v509
        %v511 = vlaneseq
        %v512 = vshrl.u32 %v511, 7
        %v513 = vsub.s32 0, %v512
        %v514 = vrot.slane %v506, %v513
        %vm515 = vcmp.eq.s32.totalorder %v510, 1
        %vm516 = vcmp.eq.s32.totalorder %v514, 1
        %v517 = vsel %vm515, %v497, 0.0
        %v518 = vsel %vm516, %v496, 0.0
        %s519 = scalar_lea.vmem %s2, 16
        %v520 = vld [vmem:[%s519] sm:$0xff]
        %v522 = vsel %vm329, %v520, 0
        %v525 = vsel %vm333, %v517, 0
        %v528 = vsel %vm333, %v518, 0
        %530 = vmatprep.subr.mxu0 0.0
        %531 = vmatpush1.msra.mxu0 0.0
        %532 = vmatprep.subr.mxu0 0.0
        %533 = vmatpush1.msra.mxu0 0.0
        %534 = vmatprep.subr.mxu0 0.0
        %535 = vmatpush1.msra.mxu0 0.0
        %536 = vmatprep.subr.mxu0 0.0
        %537 = vmatpush1.msra.mxu0 0.0
        %538 = vmatprep.subr.mxu0 0.0
        %539 = vmatpush1.msra.mxu0 0.0
        %540 = vmatprep.subr.mxu0 0.0
        %541 = vmatpush1.msra.mxu0 0.0
        %542 = vmatprep.subr.mxu0 0.0
        %543 = vmatpush1.msra.mxu0 0.0
        %544 = vmatprep.subr.mxu0 0.0
        %545 = vmatpush1.msra.mxu0 0.0
        %546 = vmatprep.subr.mxu0 0.0
        %547 = vmatpush1.msra.mxu0 0.0
        %548 = vmatprep.subr.mxu0 0.0
        %549 = vmatpush1.msra.mxu0 0.0
        %550 = vmatprep.subr.mxu0 0.0
        %551 = vmatpush1.msra.mxu0 0.0
        %552 = vmatprep.subr.mxu0 0.0
        %553 = vmatpush1.msra.mxu0 0.0
        %554 = vmatprep.subr.mxu0 0.0
        %555 = vmatpush1.msra.mxu0 0.0
        %556 = vmatprep.subr.mxu0 0.0
        %557 = vmatpush1.msra.mxu0 0.0
        %558 = vmatprep.subr.mxu0 0.0
        %559 = vmatpush1.msra.mxu0 0.0
        %560 = vmatprep.subr.mxu0 %v528
        %561 = vmatpush1.msra.mxu0 %v525
        %562 = vmatprep.subr.mxu0 0.0
        %563 = vmatpush2.msra.mxu0 0.0
        %564 = vmatprep.subr.mxu0 0.0
        %565 = vmatpush2.msra.mxu0 0.0
        %566 = vmatprep.subr.mxu0 0.0
        %567 = vmatpush2.msra.mxu0 0.0
        %568 = vmatprep.subr.mxu0 0.0
        %569 = vmatpush2.msra.mxu0 0.0
        %570 = vmatprep.subr.mxu0 0.0
        %571 = vmatpush2.msra.mxu0 0.0
        %572 = vmatprep.subr.mxu0 0.0
        %573 = vmatpush2.msra.mxu0 0.0
        %574 = vmatprep.subr.mxu0 0.0
        %575 = vmatpush2.msra.mxu0 0.0
        %576 = vmatprep.subr.mxu0 0.0
        %577 = vmatpush2.msra.mxu0 0.0
        %578 = vmatprep.subr.mxu0 0.0
        %579 = vmatpush2.msra.mxu0 0.0
        %580 = vmatprep.subr.mxu0 0.0
        %581 = vmatpush2.msra.mxu0 0.0
        %582 = vmatprep.subr.mxu0 0.0
        %583 = vmatpush2.msra.mxu0 0.0
        %584 = vmatprep.subr.mxu0 0.0
        %585 = vmatpush2.msra.mxu0 0.0
        %586 = vmatprep.subr.mxu0 0.0
        %587 = vmatpush2.msra.mxu0 0.0
        %588 = vmatprep.subr.mxu0 0.0
        %589 = vmatpush2.msra.mxu0 0.0
        %590 = vmatprep.subr.mxu0 0.0
        %591 = vmatpush2.msra.mxu0 0.0
        %592 = vmatprep.subr.mxu0 0.0
        %593 = vmatpush2.msra.mxu0 0.0
        %594 = vmatprep.mubr.f32.mxu0 0.0
        %595 = vmatmul.mubr.f32.gmra.mxu0 %v522
        %v596 = vpop.f32.mrf.mxu0
        %v597 = vadd.f32 0.0, %v596
        %v598 = vpop.f32.mrf.mxu0
        %v599 = vadd.f32 0.0, %v598
        %600 = vdwg.mxu0
        %v601 = vadd.f32 %v487, %v597
        %v602 = vadd.f32 %v489, %v599
        %603 = vrot.lane.b32.xlu0 %v265, 1
        %v604 = vpop.permute.xlu0 %603
        %605 = vrot.lane.b32.xlu0 %v267, 1
        %v606 = vpop.permute.xlu0 %605
        %vm607 = vcmp.lt.s32.totalorder %v274, 1
        %v608 = vsel %vm607, %v604, %v606
        %v609 = vsel %vm607, %v606, %v604
        %v610 = vlaneseq
        %v611 = vshrl.u32 %v610, 7
        %v612 = vsub.s32 1, %v611
        %v613 = vrot.slane %v252, %v612
        %v614 = vlaneseq
        %v615 = vshrl.u32 %v614, 7
        %v616 = vsub.s32 3, %v615
        %v617 = vrot.slane %v252, %v616
        %v618 = vlaneseq
        %v619 = vshrl.u32 %v618, 7
        %v620 = vsub.s32 1, %v619
        %v621 = vrot.slane %v613, %v620
        %v622 = vlaneseq
        %v623 = vshrl.u32 %v622, 7
        %v624 = vsub.s32 1, %v623
        %v625 = vrot.slane %v617, %v624
        %vm626 = vcmp.eq.s32.totalorder %v621, 1
        %vm627 = vcmp.eq.s32.totalorder %v625, 1
        %v628 = vsel %vm626, %v609, 0.0
        %v629 = vsel %vm627, %v608, 0.0
        %s630 = scalar_lea.vmem %s2, 24
        %v631 = vld [vmem:[%s630] sm:$0xff]
        %v633 = vsel %vm329, %v631, 0
        %v636 = vsel %vm333, %v628, 0
        %v639 = vsel %vm333, %v629, 0
        %641 = vmatprep.subr.mxu0 0.0
        %642 = vmatpush1.msra.mxu0 0.0
        %643 = vmatprep.subr.mxu0 0.0
        %644 = vmatpush1.msra.mxu0 0.0
        %645 = vmatprep.subr.mxu0 0.0
        %646 = vmatpush1.msra.mxu0 0.0
        %647 = vmatprep.subr.mxu0 0.0
        %648 = vmatpush1.msra.mxu0 0.0
        %649 = vmatprep.subr.mxu0 0.0
        %650 = vmatpush1.msra.mxu0 0.0
        %651 = vmatprep.subr.mxu0 0.0
        %652 = vmatpush1.msra.mxu0 0.0
        %653 = vmatprep.subr.mxu0 0.0
        %654 = vmatpush1.msra.mxu0 0.0
        %655 = vmatprep.subr.mxu0 0.0
        %656 = vmatpush1.msra.mxu0 0.0
        %657 = vmatprep.subr.mxu0 0.0
        %658 = vmatpush1.msra.mxu0 0.0
        %659 = vmatprep.subr.mxu0 0.0
        %660 = vmatpush1.msra.mxu0 0.0
        %661 = vmatprep.subr.mxu0 0.0
        %662 = vmatpush1.msra.mxu0 0.0
        %663 = vmatprep.subr.mxu0 0.0
        %664 = vmatpush1.msra.mxu0 0.0
        %665 = vmatprep.subr.mxu0 0.0
        %666 = vmatpush1.msra.mxu0 0.0
        %667 = vmatprep.subr.mxu0 0.0
        %668 = vmatpush1.msra.mxu0 0.0
        %669 = vmatprep.subr.mxu0 0.0
        %670 = vmatpush1.msra.mxu0 0.0
        %671 = vmatprep.subr.mxu0 %v639
        %672 = vmatpush1.msra.mxu0 %v636
        %673 = vmatprep.subr.mxu0 0.0
        %674 = vmatpush2.msra.mxu0 0.0
        %675 = vmatprep.subr.mxu0 0.0
        %676 = vmatpush2.msra.mxu0 0.0
        %677 = vmatprep.subr.mxu0 0.0
        %678 = vmatpush2.msra.mxu0 0.0
        %679 = vmatprep.subr.mxu0 0.0
        %680 = vmatpush2.msra.mxu0 0.0
        %681 = vmatprep.subr.mxu0 0.0
        %682 = vmatpush2.msra.mxu0 0.0
        %683 = vmatprep.subr.mxu0 0.0
        %684 = vmatpush2.msra.mxu0 0.0
        %685 = vmatprep.subr.mxu0 0.0
        %686 = vmatpush2.msra.mxu0 0.0
        %687 = vmatprep.subr.mxu0 0.0
        %688 = vmatpush2.msra.mxu0 0.0
        %689 = vmatprep.subr.mxu0 0.0
        %690 = vmatpush2.msra.mxu0 0.0
        %691 = vmatprep.subr.mxu0 0.0
        %692 = vmatpush2.msra.mxu0 0.0
        %693 = vmatprep.subr.mxu0 0.0
        %694 = vmatpush2.msra.mxu0 0.0
        %695 = vmatprep.subr.mxu0 0.0
        %696 = vmatpush2.msra.mxu0 0.0
        %697 = vmatprep.subr.mxu0 0.0
        %698 = vmatpush2.msra.mxu0 0.0
        %699 = vmatprep.subr.mxu0 0.0
        %700 = vmatpush2.msra.mxu0 0.0
        %701 = vmatprep.subr.mxu0 0.0
        %702 = vmatpush2.msra.mxu0 0.0
        %703 = vmatprep.subr.mxu0 0.0
        %704 = vmatpush2.msra.mxu0 0.0
        %705 = vmatprep.mubr.f32.mxu0 0.0
        %706 = vmatmul.mubr.f32.gmra.mxu0 %v633
        %v707 = vpop.f32.mrf.mxu0
        %v708 = vadd.f32 0.0, %v707
        %v709 = vpop.f32.mrf.mxu0
        %v710 = vadd.f32 0.0, %v709
        %711 = vdwg.mxu0
        %v712 = vadd.f32 %v601, %v708
        %v713 = vadd.f32 %v602, %v710
        %s714 = scalar_lea.vmem %s2, 32
        %v715 = vld [vmem:[%s714] sm:$0xff]
        %v717 = vsel %vm329, %v715, 0
        %v719 = vsel %vm333, %v265, 0
        %v721 = vsel %vm333, %v267, 0
        %723 = vmatprep.subr.mxu0 0.0
        %724 = vmatpush1.msra.mxu0 0.0
        %725 = vmatprep.subr.mxu0 0.0
        %726 = vmatpush1.msra.mxu0 0.0
        %727 = vmatprep.subr.mxu0 0.0
        %728 = vmatpush1.msra.mxu0 0.0
        %729 = vmatprep.subr.mxu0 0.0
        %730 = vmatpush1.msra.mxu0 0.0
        %731 = vmatprep.subr.mxu0 0.0
        %732 = vmatpush1.msra.mxu0 0.0
        %733 = vmatprep.subr.mxu0 0.0
        %734 = vmatpush1.msra.mxu0 0.0
        %735 = vmatprep.subr.mxu0 0.0
        %736 = vmatpush1.msra.mxu0 0.0
        %737 = vmatprep.subr.mxu0 0.0
        %738 = vmatpush1.msra.mxu0 0.0
        %739 = vmatprep.subr.mxu0 0.0
        %740 = vmatpush1.msra.mxu0 0.0
        %741 = vmatprep.subr.mxu0 0.0
        %742 = vmatpush1.msra.mxu0 0.0
        %743 = vmatprep.subr.mxu0 0.0
        %744 = vmatpush1.msra.mxu0 0.0
        %745 = vmatprep.subr.mxu0 0.0
        %746 = vmatpush1.msra.mxu0 0.0
        %747 = vmatprep.subr.mxu0 0.0
        %748 = vmatpush1.msra.mxu0 0.0
        %749 = vmatprep.subr.mxu0 0.0
        %750 = vmatpush1.msra.mxu0 0.0
        %751 = vmatprep.subr.mxu0 0.0
        %752 = vmatpush1.msra.mxu0 0.0
        %753 = vmatprep.subr.mxu0 %v721
        %754 = vmatpush1.msra.mxu0 %v719
        %755 = vmatprep.subr.mxu0 0.0
        %756 = vmatpush2.msra.mxu0 0.0
        %757 = vmatprep.subr.mxu0 0.0
        %758 = vmatpush2.msra.mxu0 0.0
        %759 = vmatprep.subr.mxu0 0.0
        %760 = vmatpush2.msra.mxu0 0.0
        %761 = vmatprep.subr.mxu0 0.0
        %762 = vmatpush2.msra.mxu0 0.0
        %763 = vmatprep.subr.mxu0 0.0
        %764 = vmatpush2.msra.mxu0 0.0
        %765 = vmatprep.subr.mxu0 0.0
        %766 = vmatpush2.msra.mxu0 0.0
        %767 = vmatprep.subr.mxu0 0.0
        %768 = vmatpush2.msra.mxu0 0.0
        %769 = vmatprep.subr.mxu0 0.0
        %770 = vmatpush2.msra.mxu0 0.0
        %771 = vmatprep.subr.mxu0 0.0
        %772 = vmatpush2.msra.mxu0 0.0
        %773 = vmatprep.subr.mxu0 0.0
        %774 = vmatpush2.msra.mxu0 0.0
        %775 = vmatprep.subr.mxu0 0.0
        %776 = vmatpush2.msra.mxu0 0.0
        %777 = vmatprep.subr.mxu0 0.0
        %778 = vmatpush2.msra.mxu0 0.0
        %779 = vmatprep.subr.mxu0 0.0
        %780 = vmatpush2.msra.mxu0 0.0
        %781 = vmatprep.subr.mxu0 0.0
        %782 = vmatpush2.msra.mxu0 0.0
        %783 = vmatprep.subr.mxu0 0.0
        %784 = vmatpush2.msra.mxu0 0.0
        %785 = vmatprep.subr.mxu0 0.0
        %786 = vmatpush2.msra.mxu0 0.0
        %787 = vmatprep.mubr.f32.mxu0 0.0
        %788 = vmatmul.mubr.f32.gmra.mxu0 %v717
        %v789 = vpop.f32.mrf.mxu0
        %v790 = vadd.f32 0.0, %v789
        %v791 = vpop.f32.mrf.mxu0
        %v792 = vadd.f32 0.0, %v791
        %793 = vdwg.mxu0
        %v794 = vadd.f32 %v712, %v790
        %v795 = vadd.f32 %v713, %v792
        %796 = vrot.lane.b32.xlu0 %v265, 127
        %v797 = vpop.permute.xlu0 %796
        %798 = vrot.lane.b32.xlu0 %v267, 127
        %v799 = vpop.permute.xlu0 %798
        %vm800 = vcmp.lt.s32.totalorder %v274, 127
        %v801 = vsel %vm800, %v797, %v799
        %v802 = vsel %vm800, %v799, %v797
        %v803 = vlaneseq
        %v804 = vshrl.u32 %v803, 7
        %v805 = vsub.s32 1, %v804
        %v806 = vrot.slane %v258, %v805
        %v807 = vlaneseq
        %v808 = vshrl.u32 %v807, 7
        %v809 = vsub.s32 3, %v808
        %v810 = vrot.slane %v258, %v809
        %v811 = vlaneseq
        %v812 = vshrl.u32 %v811, 7
        %v813 = vsub.s32 1, %v812
        %v814 = vrot.slane %v806, %v813
        %v815 = vlaneseq
        %v816 = vshrl.u32 %v815, 7
        %v817 = vsub.s32 1, %v816
        %v818 = vrot.slane %v810, %v817
        %vm819 = vcmp.eq.s32.totalorder %v814, 1
        %vm820 = vcmp.eq.s32.totalorder %v818, 1
        %v821 = vsel %vm819, %v801, 0.0
        %v822 = vsel %vm820, %v802, 0.0
        %s823 = scalar_lea.vmem %s2, 40
        %v824 = vld [vmem:[%s823] sm:$0xff]
        %v826 = vsel %vm329, %v824, 0
        %v829 = vsel %vm333, %v821, 0
        %v832 = vsel %vm333, %v822, 0
        %834 = vmatprep.subr.mxu0 0.0
        %835 = vmatpush1.msra.mxu0 0.0
        %836 = vmatprep.subr.mxu0 0.0
        %837 = vmatpush1.msra.mxu0 0.0
        %838 = vmatprep.subr.mxu0 0.0
        %839 = vmatpush1.msra.mxu0 0.0
        %840 = vmatprep.subr.mxu0 0.0
        %841 = vmatpush1.msra.mxu0 0.0
        %842 = vmatprep.subr.mxu0 0.0
        %843 = vmatpush1.msra.mxu0 0.0
        %844 = vmatprep.subr.mxu0 0.0
        %845 = vmatpush1.msra.mxu0 0.0
        %846 = vmatprep.subr.mxu0 0.0
        %847 = vmatpush1.msra.mxu0 0.0
        %848 = vmatprep.subr.mxu0 0.0
        %849 = vmatpush1.msra.mxu0 0.0
        %850 = vmatprep.subr.mxu0 0.0
        %851 = vmatpush1.msra.mxu0 0.0
        %852 = vmatprep.subr.mxu0 0.0
        %853 = vmatpush1.msra.mxu0 0.0
        %854 = vmatprep.subr.mxu0 0.0
        %855 = vmatpush1.msra.mxu0 0.0
        %856 = vmatprep.subr.mxu0 0.0
        %857 = vmatpush1.msra.mxu0 0.0
        %858 = vmatprep.subr.mxu0 0.0
        %859 = vmatpush1.msra.mxu0 0.0
        %860 = vmatprep.subr.mxu0 0.0
        %861 = vmatpush1.msra.mxu0 0.0
        %862 = vmatprep.subr.mxu0 0.0
        %863 = vmatpush1.msra.mxu0 0.0
        %864 = vmatprep.subr.mxu0 %v832
        %865 = vmatpush1.msra.mxu0 %v829
        %866 = vmatprep.subr.mxu0 0.0
        %867 = vmatpush2.msra.mxu0 0.0
        %868 = vmatprep.subr.mxu0 0.0
        %869 = vmatpush2.msra.mxu0 0.0
        %870 = vmatprep.subr.mxu0 0.0
        %871 = vmatpush2.msra.mxu0 0.0
        %872 = vmatprep.subr.mxu0 0.0
        %873 = vmatpush2.msra.mxu0 0.0
        %874 = vmatprep.subr.mxu0 0.0
        %875 = vmatpush2.msra.mxu0 0.0
        %876 = vmatprep.subr.mxu0 0.0
        %877 = vmatpush2.msra.mxu0 0.0
        %878 = vmatprep.subr.mxu0 0.0
        %879 = vmatpush2.msra.mxu0 0.0
        %880 = vmatprep.subr.mxu0 0.0
        %881 = vmatpush2.msra.mxu0 0.0
        %882 = vmatprep.subr.mxu0 0.0
        %883 = vmatpush2.msra.mxu0 0.0
        %884 = vmatprep.subr.mxu0 0.0
        %885 = vmatpush2.msra.mxu0 0.0
        %886 = vmatprep.subr.mxu0 0.0
        %887 = vmatpush2.msra.mxu0 0.0
        %888 = vmatprep.subr.mxu0 0.0
        %889 = vmatpush2.msra.mxu0 0.0
        %890 = vmatprep.subr.mxu0 0.0
        %891 = vmatpush2.msra.mxu0 0.0
        %892 = vmatprep.subr.mxu0 0.0
        %893 = vmatpush2.msra.mxu0 0.0
        %894 = vmatprep.subr.mxu0 0.0
        %895 = vmatpush2.msra.mxu0 0.0
        %896 = vmatprep.subr.mxu0 0.0
        %897 = vmatpush2.msra.mxu0 0.0
        %898 = vmatprep.mubr.f32.mxu0 0.0
        %899 = vmatmul.mubr.f32.gmra.mxu0 %v826
        %v900 = vpop.f32.mrf.mxu0
        %v901 = vadd.f32 0.0, %v900
        %v902 = vpop.f32.mrf.mxu0
        %v903 = vadd.f32 0.0, %v902
        %904 = vdwg.mxu0
        %v905 = vadd.f32 %v794, %v901
        %v906 = vadd.f32 %v795, %v903
        %907 = vrot.lane.b32.xlu0 %v265, 113
        %v908 = vpop.permute.xlu0 %907
        %909 = vrot.lane.b32.xlu0 %v267, 113
        %v910 = vpop.permute.xlu0 %909
        %vm911 = vcmp.lt.s32.totalorder %v274, 113
        %v912 = vsel %vm911, %v908, %v910
        %v913 = vsel %vm911, %v910, %v908
        %v914 = vsel %vm263, 1, 0
        %v915 = vlaneseq
        %v916 = vshrl.u32 %v915, 7
        %v917 = vsub.s32 0, %v916
        %v918 = vrot.slane %v914, %v917
        %v919 = vlaneseq
        %v920 = vshrl.u32 %v919, 7
        %v921 = vsub.s32 2, %v920
        %v922 = vrot.slane %v914, %v921
        %v923 = vlaneseq
        %v924 = vshrl.u32 %v923, 7
        %v925 = vsub.s32 0, %v924
        %v926 = vrot.slane %v918, %v925
        %v927 = vlaneseq
        %v928 = vshrl.u32 %v927, 7
        %v929 = vsub.s32 0, %v928
        %v930 = vrot.slane %v922, %v929
        %vm931 = vcmp.eq.s32.totalorder %v926, 1
        %vm932 = vcmp.eq.s32.totalorder %v930, 1
        %v933 = vsel %vm931, %v912, 0.0
        %v934 = vsel %vm932, %v913, 0.0
        %s935 = scalar_lea.vmem %s2, 48
        %v936 = vld [vmem:[%s935] sm:$0xff]
        %v938 = vsel %vm329, %v936, 0
        %v941 = vsel %vm333, %v933, 0
        %v944 = vsel %vm333, %v934, 0
        %946 = vmatprep.subr.mxu0 0.0
        %947 = vmatpush1.msra.mxu0 0.0
        %948 = vmatprep.subr.mxu0 0.0
        %949 = vmatpush1.msra.mxu0 0.0
        %950 = vmatprep.subr.mxu0 0.0
        %951 = vmatpush1.msra.mxu0 0.0
        %952 = vmatprep.subr.mxu0 0.0
        %953 = vmatpush1.msra.mxu0 0.0
        %954 = vmatprep.subr.mxu0 0.0
        %955 = vmatpush1.msra.mxu0 0.0
        %956 = vmatprep.subr.mxu0 0.0
        %957 = vmatpush1.msra.mxu0 0.0
        %958 = vmatprep.subr.mxu0 0.0
        %959 = vmatpush1.msra.mxu0 0.0
        %960 = vmatprep.subr.mxu0 0.0
        %961 = vmatpush1.msra.mxu0 0.0
        %962 = vmatprep.subr.mxu0 0.0
        %963 = vmatpush1.msra.mxu0 0.0
        %964 = vmatprep.subr.mxu0 0.0
        %965 = vmatpush1.msra.mxu0 0.0
        %966 = vmatprep.subr.mxu0 0.0
        %967 = vmatpush1.msra.mxu0 0.0
        %968 = vmatprep.subr.mxu0 0.0
        %969 = vmatpush1.msra.mxu0 0.0
        %970 = vmatprep.subr.mxu0 0.0
        %971 = vmatpush1.msra.mxu0 0.0
        %972 = vmatprep.subr.mxu0 0.0
        %973 = vmatpush1.msra.mxu0 0.0
        %974 = vmatprep.subr.mxu0 0.0
        %975 = vmatpush1.msra.mxu0 0.0
        %976 = vmatprep.subr.mxu0 %v944
        %977 = vmatpush1.msra.mxu0 %v941
        %978 = vmatprep.subr.mxu0 0.0
        %979 = vmatpush2.msra.mxu0 0.0
        %980 = vmatprep.subr.mxu0 0.0
        %981 = vmatpush2.msra.mxu0 0.0
        %982 = vmatprep.subr.mxu0 0.0
        %983 = vmatpush2.msra.mxu0 0.0
        %984 = vmatprep.subr.mxu0 0.0
        %985 = vmatpush2.msra.mxu0 0.0
        %986 = vmatprep.subr.mxu0 0.0
        %987 = vmatpush2.msra.mxu0 0.0
        %988 = vmatprep.subr.mxu0 0.0
        %989 = vmatpush2.msra.mxu0 0.0
        %990 = vmatprep.subr.mxu0 0.0
        %991 = vmatpush2.msra.mxu0 0.0
        %992 = vmatprep.subr.mxu0 0.0
        %993 = vmatpush2.msra.mxu0 0.0
        %994 = vmatprep.subr.mxu0 0.0
        %995 = vmatpush2.msra.mxu0 0.0
        %996 = vmatprep.subr.mxu0 0.0
        %997 = vmatpush2.msra.mxu0 0.0
        %998 = vmatprep.subr.mxu0 0.0
        %999 = vmatpush2.msra.mxu0 0.0
        %1000 = vmatprep.subr.mxu0 0.0
        %1001 = vmatpush2.msra.mxu0 0.0
        %1002 = vmatprep.subr.mxu0 0.0
        %1003 = vmatpush2.msra.mxu0 0.0
        %1004 = vmatprep.subr.mxu0 0.0
        %1005 = vmatpush2.msra.mxu0 0.0
        %1006 = vmatprep.subr.mxu0 0.0
        %1007 = vmatpush2.msra.mxu0 0.0
        %1008 = vmatprep.subr.mxu0 0.0
        %1009 = vmatpush2.msra.mxu0 0.0
        %1010 = vmatprep.mubr.f32.mxu0 0.0
        %1011 = vmatmul.mubr.f32.gmra.mxu0 %v938
        %v1012 = vpop.f32.mrf.mxu0
        %v1013 = vadd.f32 0.0, %v1012
        %v1014 = vpop.f32.mrf.mxu0
        %v1015 = vadd.f32 0.0, %v1014
        %1016 = vdwg.mxu0
        %v1017 = vadd.f32 %v905, %v1013
        %v1018 = vadd.f32 %v906, %v1015
        %1019 = vrot.lane.b32.xlu0 %v265, 112
        %v1020 = vpop.permute.xlu0 %1019
        %1021 = vrot.lane.b32.xlu0 %v267, 112
        %v1022 = vpop.permute.xlu0 %1021
        %vm1023 = vcmp.lt.s32.totalorder %v274, 112
        %v1024 = vsel %vm1023, %v1020, %v1022
        %v1025 = vsel %vm1023, %v1022, %v1020
        %v1026 = vlaneseq
        %v1027 = vshrl.u32 %v1026, 7
        %v1028 = vsub.s32 0, %v1027
        %v1029 = vrot.slane %v258, %v1028
        %v1030 = vlaneseq
        %v1031 = vshrl.u32 %v1030, 7
        %v1032 = vsub.s32 2, %v1031
        %v1033 = vrot.slane %v258, %v1032
        %v1034 = vlaneseq
        %v1035 = vshrl.u32 %v1034, 7
        %v1036 = vsub.s32 0, %v1035
        %v1037 = vrot.slane %v1029, %v1036
        %v1038 = vlaneseq
        %v1039 = vshrl.u32 %v1038, 7
        %v1040 = vsub.s32 0, %v1039
        %v1041 = vrot.slane %v1033, %v1040
        %vm1042 = vcmp.eq.s32.totalorder %v1037, 1
        %vm1043 = vcmp.eq.s32.totalorder %v1041, 1
        %v1044 = vsel %vm1042, %v1024, 0.0
        %v1045 = vsel %vm1043, %v1025, 0.0
        %s1046 = scalar_lea.vmem %s2, 56
        %v1047 = vld [vmem:[%s1046] sm:$0xff]
        %v1049 = vsel %vm329, %v1047, 0
        %v1052 = vsel %vm333, %v1044, 0
        %v1055 = vsel %vm333, %v1045, 0
        %1057 = vmatprep.subr.mxu0 0.0
        %1058 = vmatpush1.msra.mxu0 0.0
        %1059 = vmatprep.subr.mxu0 0.0
        %1060 = vmatpush1.msra.mxu0 0.0
        %1061 = vmatprep.subr.mxu0 0.0
        %1062 = vmatpush1.msra.mxu0 0.0
        %1063 = vmatprep.subr.mxu0 0.0
        %1064 = vmatpush1.msra.mxu0 0.0
        %1065 = vmatprep.subr.mxu0 0.0
        %1066 = vmatpush1.msra.mxu0 0.0
        %1067 = vmatprep.subr.mxu0 0.0
        %1068 = vmatpush1.msra.mxu0 0.0
        %1069 = vmatprep.subr.mxu0 0.0
        %1070 = vmatpush1.msra.mxu0 0.0
        %1071 = vmatprep.subr.mxu0 0.0
        %1072 = vmatpush1.msra.mxu0 0.0
        %1073 = vmatprep.subr.mxu0 0.0
        %1074 = vmatpush1.msra.mxu0 0.0
        %1075 = vmatprep.subr.mxu0 0.0
        %1076 = vmatpush1.msra.mxu0 0.0
        %1077 = vmatprep.subr.mxu0 0.0
        %1078 = vmatpush1.msra.mxu0 0.0
        %1079 = vmatprep.subr.mxu0 0.0
        %1080 = vmatpush1.msra.mxu0 0.0
        %1081 = vmatprep.subr.mxu0 0.0
        %1082 = vmatpush1.msra.mxu0 0.0
        %1083 = vmatprep.subr.mxu0 0.0
        %1084 = vmatpush1.msra.mxu0 0.0
        %1085 = vmatprep.subr.mxu0 0.0
        %1086 = vmatpush1.msra.mxu0 0.0
        %1087 = vmatprep.subr.mxu0 %v1055
        %1088 = vmatpush1.msra.mxu0 %v1052
        %1089 = vmatprep.subr.mxu0 0.0
        %1090 = vmatpush2.msra.mxu0 0.0
        %1091 = vmatprep.subr.mxu0 0.0
        %1092 = vmatpush2.msra.mxu0 0.0
        %1093 = vmatprep.subr.mxu0 0.0
        %1094 = vmatpush2.msra.mxu0 0.0
        %1095 = vmatprep.subr.mxu0 0.0
        %1096 = vmatpush2.msra.mxu0 0.0
        %1097 = vmatprep.subr.mxu0 0.0
        %1098 = vmatpush2.msra.mxu0 0.0
        %1099 = vmatprep.subr.mxu0 0.0
        %1100 = vmatpush2.msra.mxu0 0.0
        %1101 = vmatprep.subr.mxu0 0.0
        %1102 = vmatpush2.msra.mxu0 0.0
        %1103 = vmatprep.subr.mxu0 0.0
        %1104 = vmatpush2.msra.mxu0 0.0
        %1105 = vmatprep.subr.mxu0 0.0
        %1106 = vmatpush2.msra.mxu0 0.0
        %1107 = vmatprep.subr.mxu0 0.0
        %1108 = vmatpush2.msra.mxu0 0.0
        %1109 = vmatprep.subr.mxu0 0.0
        %1110 = vmatpush2.msra.mxu0 0.0
        %1111 = vmatprep.subr.mxu0 0.0
        %1112 = vmatpush2.msra.mxu0 0.0
        %1113 = vmatprep.subr.mxu0 0.0
        %1114 = vmatpush2.msra.mxu0 0.0
        %1115 = vmatprep.subr.mxu0 0.0
        %1116 = vmatpush2.msra.mxu0 0.0
        %1117 = vmatprep.subr.mxu0 0.0
        %1118 = vmatpush2.msra.mxu0 0.0
        %1119 = vmatprep.subr.mxu0 0.0
        %1120 = vmatpush2.msra.mxu0 0.0
        %1121 = vmatprep.mubr.f32.mxu0 0.0
        %1122 = vmatmul.mubr.f32.gmra.mxu0 %v1049
        %v1123 = vpop.f32.mrf.mxu0
        %v1124 = vadd.f32 0.0, %v1123
        %v1125 = vpop.f32.mrf.mxu0
        %v1126 = vadd.f32 0.0, %v1125
        %1127 = vdwg.mxu0
        %v1128 = vadd.f32 %v1017, %v1124
        %v1129 = vadd.f32 %v1018, %v1126
        %1130 = vrot.lane.b32.xlu0 %v265, 111
        %v1131 = vpop.permute.xlu0 %1130
        %1132 = vrot.lane.b32.xlu0 %v267, 111
        %v1133 = vpop.permute.xlu0 %1132
        %vm1134 = vcmp.lt.s32.totalorder %v274, 111
        %v1135 = vsel %vm1134, %v1131, %v1133
        %v1136 = vsel %vm1134, %v1133, %v1131
        %v1137 = vsel %vm264, 1, 0
        %v1138 = vlaneseq
        %v1139 = vshrl.u32 %v1138, 7
        %v1140 = vsub.s32 0, %v1139
        %v1141 = vrot.slane %v1137, %v1140
        %v1142 = vlaneseq
        %v1143 = vshrl.u32 %v1142, 7
        %v1144 = vsub.s32 2, %v1143
        %v1145 = vrot.slane %v1137, %v1144
        %v1146 = vlaneseq
        %v1147 = vshrl.u32 %v1146, 7
        %v1148 = vsub.s32 0, %v1147
        %v1149 = vrot.slane %v1141, %v1148
        %v1150 = vlaneseq
        %v1151 = vshrl.u32 %v1150, 7
        %v1152 = vsub.s32 0, %v1151
        %v1153 = vrot.slane %v1145, %v1152
        %vm1154 = vcmp.eq.s32.totalorder %v1149, 1
        %vm1155 = vcmp.eq.s32.totalorder %v1153, 1
        %v1156 = vsel %vm1154, %v1135, 0.0
        %v1157 = vsel %vm1155, %v1136, 0.0
        %s1158 = scalar_lea.vmem %s2, 64
        %v1159 = vld [vmem:[%s1158] sm:$0xff]
        %v1161 = vsel %vm329, %v1159, 0
        %v1164 = vsel %vm333, %v1156, 0
        %v1167 = vsel %vm333, %v1157, 0
        %1169 = vmatprep.subr.mxu0 0.0
        %1170 = vmatpush1.msra.mxu0 0.0
        %1171 = vmatprep.subr.mxu0 0.0
        %1172 = vmatpush1.msra.mxu0 0.0
        %1173 = vmatprep.subr.mxu0 0.0
        %1174 = vmatpush1.msra.mxu0 0.0
        %1175 = vmatprep.subr.mxu0 0.0
        %1176 = vmatpush1.msra.mxu0 0.0
        %1177 = vmatprep.subr.mxu0 0.0
        %1178 = vmatpush1.msra.mxu0 0.0
        %1179 = vmatprep.subr.mxu0 0.0
        %1180 = vmatpush1.msra.mxu0 0.0
        %1181 = vmatprep.subr.mxu0 0.0
        %1182 = vmatpush1.msra.mxu0 0.0
        %1183 = vmatprep.subr.mxu0 0.0
        %1184 = vmatpush1.msra.mxu0 0.0
        %1185 = vmatprep.subr.mxu0 0.0
        %1186 = vmatpush1.msra.mxu0 0.0
        %1187 = vmatprep.subr.mxu0 0.0
        %1188 = vmatpush1.msra.mxu0 0.0
        %1189 = vmatprep.subr.mxu0 0.0
        %1190 = vmatpush1.msra.mxu0 0.0
        %1191 = vmatprep.subr.mxu0 0.0
        %1192 = vmatpush1.msra.mxu0 0.0
        %1193 = vmatprep.subr.mxu0 0.0
        %1194 = vmatpush1.msra.mxu0 0.0
        %1195 = vmatprep.subr.mxu0 0.0
        %1196 = vmatpush1.msra.mxu0 0.0
        %1197 = vmatprep.subr.mxu0 0.0
        %1198 = vmatpush1.msra.mxu0 0.0
        %1199 = vmatprep.subr.mxu0 %v1167
        %1200 = vmatpush1.msra.mxu0 %v1164
        %1201 = vmatprep.subr.mxu0 0.0
        %1202 = vmatpush2.msra.mxu0 0.0
        %1203 = vmatprep.subr.mxu0 0.0
        %1204 = vmatpush2.msra.mxu0 0.0
        %1205 = vmatprep.subr.mxu0 0.0
        %1206 = vmatpush2.msra.mxu0 0.0
        %1207 = vmatprep.subr.mxu0 0.0
        %1208 = vmatpush2.msra.mxu0 0.0
        %1209 = vmatprep.subr.mxu0 0.0
        %1210 = vmatpush2.msra.mxu0 0.0
        %1211 = vmatprep.subr.mxu0 0.0
        %1212 = vmatpush2.msra.mxu0 0.0
        %1213 = vmatprep.subr.mxu0 0.0
        %1214 = vmatpush2.msra.mxu0 0.0
        %1215 = vmatprep.subr.mxu0 0.0
        %1216 = vmatpush2.msra.mxu0 0.0
        %1217 = vmatprep.subr.mxu0 0.0
        %1218 = vmatpush2.msra.mxu0 0.0
        %1219 = vmatprep.subr.mxu0 0.0
        %1220 = vmatpush2.msra.mxu0 0.0
        %1221 = vmatprep.subr.mxu0 0.0
        %1222 = vmatpush2.msra.mxu0 0.0
        %1223 = vmatprep.subr.mxu0 0.0
        %1224 = vmatpush2.msra.mxu0 0.0
        %1225 = vmatprep.subr.mxu0 0.0
        %1226 = vmatpush2.msra.mxu0 0.0
        %1227 = vmatprep.subr.mxu0 0.0
        %1228 = vmatpush2.msra.mxu0 0.0
        %1229 = vmatprep.subr.mxu0 0.0
        %1230 = vmatpush2.msra.mxu0 0.0
        %1231 = vmatprep.subr.mxu0 0.0
        %1232 = vmatpush2.msra.mxu0 0.0
        %1233 = vmatprep.mubr.f32.mxu0 0.0
        %1234 = vmatmul.mubr.f32.gmra.mxu0 %v1161
        %v1235 = vpop.f32.mrf.mxu0
        %v1236 = vadd.f32 0.0, %v1235
        %v1237 = vpop.f32.mrf.mxu0
        %v1238 = vadd.f32 0.0, %v1237
        %1239 = vdwg.mxu0
        %v1240 = vadd.f32 %v1128, %v1236
        %v1241 = vadd.f32 %v1129, %v1238
        %v1242 = vld [vmem:[%s3] sm:$0xff]
        %1244 = vset.pattern.permute.xlu0 0
        %1245 = vperm.xlu0 %1244, %v1242
        %v1246 = vpop.permute.xlu0 %1245
        %v1248 = vadd.f32 %v1240, %v1246
        %v1249 = vadd.f32 %v1241, %v1246
        %v1250 = vmax.f32 %v1248, 0.0
        %v1251 = vmax.f32 %v1249, 0.0
        %1252 = vrot.lane.b32.xlu0 %v1250, 17
        %v1253 = vpop.permute.xlu0 %1252
        %1254 = vrot.lane.b32.xlu0 %v1251, 17
        %v1255 = vpop.permute.xlu0 %1254
        %v1256 = vsel %vm275, %v1253, %v1255
        %v1257 = vsel %vm275, %v1255, %v1253
        %v1258 = vsel %vm295, %v1257, 0.0
        %v1259 = vsel %vm296, %v1256, 0.0
        %v1260 = vld [vmem:[%s4] sm:$0xff]
        %1261 = vrot.lane.b32.xlu0 %v1250, 16
        %v1262 = vpop.permute.xlu0 %1261
        %1263 = vrot.lane.b32.xlu0 %v1251, 16
        %v1264 = vpop.permute.xlu0 %1263
        %v1265 = vsel %vm304, %v1262, %v1264
        %v1266 = vsel %vm304, %v1264, %v1262
        %v1267 = vsel %vm323, %v1266, 0.0
        %v1268 = vsel %vm324, %v1265, 0.0
        %s1269 = scalar_lea.vmem %s4, 8
        %v1270 = vld [vmem:[%s1269] sm:$0xff]
        %vm1271 = vcmask 64512
        %v1273 = vsel %vm1271, %v1270, 0
        %1275 = vmatprep.subr.mxu0 0.0
        %1276 = vmatpush1.msra.mxu0 0.0
        %1277 = vmatprep.subr.mxu0 0.0
        %1278 = vmatpush1.msra.mxu0 0.0
        %1279 = vmatprep.subr.mxu0 0.0
        %1280 = vmatpush1.msra.mxu0 0.0
        %1281 = vmatprep.subr.mxu0 0.0
        %1282 = vmatpush1.msra.mxu0 0.0
        %1283 = vmatprep.subr.mxu0 0.0
        %1284 = vmatpush1.msra.mxu0 0.0
        %1285 = vmatprep.subr.mxu0 0.0
        %1286 = vmatpush1.msra.mxu0 0.0
        %1287 = vmatprep.subr.mxu0 0.0
        %1288 = vmatpush1.msra.mxu0 0.0
        %1289 = vmatprep.subr.mxu0 0.0
        %1290 = vmatpush1.msra.mxu0 0.0
        %1291 = vmatprep.subr.mxu0 0.0
        %1292 = vmatpush1.msra.mxu0 0.0
        %1293 = vmatprep.subr.mxu0 0.0
        %1294 = vmatpush1.msra.mxu0 0.0
        %1295 = vmatprep.subr.mxu0 0.0
        %1296 = vmatpush1.msra.mxu0 0.0
        %1297 = vmatprep.subr.mxu0 0.0
        %1298 = vmatpush1.msra.mxu0 0.0
        %1299 = vmatprep.subr.mxu0 0.0
        %1300 = vmatpush1.msra.mxu0 0.0
        %1301 = vmatprep.subr.mxu0 0.0
        %1302 = vmatpush1.msra.mxu0 0.0
        %1303 = vmatprep.subr.mxu0 0.0
        %1304 = vmatpush1.msra.mxu0 0.0
        %1305 = vmatprep.subr.mxu0 %v1268
        %1306 = vmatpush1.msra.mxu0 %v1267
        %1307 = vmatprep.subr.mxu0 0.0
        %1308 = vmatpush2.msra.mxu0 0.0
        %1309 = vmatprep.subr.mxu0 0.0
        %1310 = vmatpush2.msra.mxu0 0.0
        %1311 = vmatprep.subr.mxu0 0.0
        %1312 = vmatpush2.msra.mxu0 0.0
        %1313 = vmatprep.subr.mxu0 0.0
        %1314 = vmatpush2.msra.mxu0 0.0
        %1315 = vmatprep.subr.mxu0 0.0
        %1316 = vmatpush2.msra.mxu0 0.0
        %1317 = vmatprep.subr.mxu0 0.0
        %1318 = vmatpush2.msra.mxu0 0.0
        %1319 = vmatprep.subr.mxu0 0.0
        %1320 = vmatpush2.msra.mxu0 0.0
        %1321 = vmatprep.subr.mxu0 0.0
        %1322 = vmatpush2.msra.mxu0 0.0
        %1323 = vmatprep.subr.mxu0 0.0
        %1324 = vmatpush2.msra.mxu0 0.0
        %1325 = vmatprep.subr.mxu0 0.0
        %1326 = vmatpush2.msra.mxu0 0.0
        %1327 = vmatprep.subr.mxu0 0.0
        %1328 = vmatpush2.msra.mxu0 0.0
        %1329 = vmatprep.subr.mxu0 0.0
        %1330 = vmatpush2.msra.mxu0 0.0
        %1331 = vmatprep.subr.mxu0 0.0
        %1332 = vmatpush2.msra.mxu0 0.0
        %1333 = vmatprep.subr.mxu0 0.0
        %1334 = vmatpush2.msra.mxu0 0.0
        %1335 = vmatprep.subr.mxu0 0.0
        %1336 = vmatpush2.msra.mxu0 0.0
        %1337 = vmatprep.subr.mxu0 0.0
        %1338 = vmatpush2.msra.mxu0 0.0
        %1339 = vmatprep.mubr.f32.mxu0 0.0
        %1340 = vmatmul.mubr.f32.gmra.mxu0 %v1273
        %v1341 = vpop.f32.mrf.mxu0
        %v1342 = vadd.f32 0.0, %v1341
        %v1343 = vpop.f32.mrf.mxu0
        %v1344 = vadd.f32 0.0, %v1343
        %1345 = vdwg.mxu0
        %v1347 = vsel %vm1271, %v1260, 0
        %1349 = vmatprep.subr.mxu0 0.0
        %1350 = vmatpush1.msra.mxu0 0.0
        %1351 = vmatprep.subr.mxu0 0.0
        %1352 = vmatpush1.msra.mxu0 0.0
        %1353 = vmatprep.subr.mxu0 0.0
        %1354 = vmatpush1.msra.mxu0 0.0
        %1355 = vmatprep.subr.mxu0 0.0
        %1356 = vmatpush1.msra.mxu0 0.0
        %1357 = vmatprep.subr.mxu0 0.0
        %1358 = vmatpush1.msra.mxu0 0.0
        %1359 = vmatprep.subr.mxu0 0.0
        %1360 = vmatpush1.msra.mxu0 0.0
        %1361 = vmatprep.subr.mxu0 0.0
        %1362 = vmatpush1.msra.mxu0 0.0
        %1363 = vmatprep.subr.mxu0 0.0
        %1364 = vmatpush1.msra.mxu0 0.0
        %1365 = vmatprep.subr.mxu0 0.0
        %1366 = vmatpush1.msra.mxu0 0.0
        %1367 = vmatprep.subr.mxu0 0.0
        %1368 = vmatpush1.msra.mxu0 0.0
        %1369 = vmatprep.subr.mxu0 0.0
        %1370 = vmatpush1.msra.mxu0 0.0
        %1371 = vmatprep.subr.mxu0 0.0
        %1372 = vmatpush1.msra.mxu0 0.0
        %1373 = vmatprep.subr.mxu0 0.0
        %1374 = vmatpush1.msra.mxu0 0.0
        %1375 = vmatprep.subr.mxu0 0.0
        %1376 = vmatpush1.msra.mxu0 0.0
        %1377 = vmatprep.subr.mxu0 0.0
        %1378 = vmatpush1.msra.mxu0 0.0
        %1379 = vmatprep.subr.mxu0 %v1259
        %1380 = vmatpush1.msra.mxu0 %v1258
        %1381 = vmatprep.subr.mxu0 0.0
        %1382 = vmatpush2.msra.mxu0 0.0
        %1383 = vmatprep.subr.mxu0 0.0
        %1384 = vmatpush2.msra.mxu0 0.0
        %1385 = vmatprep.subr.mxu0 0.0
        %1386 = vmatpush2.msra.mxu0 0.0
        %1387 = vmatprep.subr.mxu0 0.0
        %1388 = vmatpush2.msra.mxu0 0.0
        %1389 = vmatprep.subr.mxu0 0.0
        %1390 = vmatpush2.msra.mxu0 0.0
        %1391 = vmatprep.subr.mxu0 0.0
        %1392 = vmatpush2.msra.mxu0 0.0
        %1393 = vmatprep.subr.mxu0 0.0
        %1394 = vmatpush2.msra.mxu0 0.0
        %1395 = vmatprep.subr.mxu0 0.0
        %1396 = vmatpush2.msra.mxu0 0.0
        %1397 = vmatprep.subr.mxu0 0.0
        %1398 = vmatpush2.msra.mxu0 0.0
        %1399 = vmatprep.subr.mxu0 0.0
        %1400 = vmatpush2.msra.mxu0 0.0
        %1401 = vmatprep.subr.mxu0 0.0
        %1402 = vmatpush2.msra.mxu0 0.0
        %1403 = vmatprep.subr.mxu0 0.0
        %1404 = vmatpush2.msra.mxu0 0.0
        %1405 = vmatprep.subr.mxu0 0.0
        %1406 = vmatpush2.msra.mxu0 0.0
        %1407 = vmatprep.subr.mxu0 0.0
        %1408 = vmatpush2.msra.mxu0 0.0
        %1409 = vmatprep.subr.mxu0 0.0
        %1410 = vmatpush2.msra.mxu0 0.0
        %1411 = vmatprep.subr.mxu0 0.0
        %1412 = vmatpush2.msra.mxu0 0.0
        %1413 = vmatprep.mubr.f32.mxu0 0.0
        %1414 = vmatmul.mubr.f32.gmra.mxu0 %v1347
        %v1415 = vpop.f32.mrf.mxu0
        %v1416 = vadd.f32 %v1342, %v1415
        %v1417 = vpop.f32.mrf.mxu0
        %v1418 = vadd.f32 %v1344, %v1417
        %1419 = vdwg.mxu0
        %1420 = vrot.lane.b32.xlu0 %v1250, 15
        %v1421 = vpop.permute.xlu0 %1420
        %1422 = vrot.lane.b32.xlu0 %v1251, 15
        %v1423 = vpop.permute.xlu0 %1422
        %v1424 = vsel %vm495, %v1421, %v1423
        %v1425 = vsel %vm495, %v1423, %v1421
        %v1426 = vsel %vm515, %v1425, 0.0
        %v1427 = vsel %vm516, %v1424, 0.0
        %s1428 = scalar_lea.vmem %s4, 16
        %v1429 = vld [vmem:[%s1428] sm:$0xff]
        %v1431 = vsel %vm1271, %v1429, 0
        %1433 = vmatprep.subr.mxu0 0.0
        %1434 = vmatpush1.msra.mxu0 0.0
        %1435 = vmatprep.subr.mxu0 0.0
        %1436 = vmatpush1.msra.mxu0 0.0
        %1437 = vmatprep.subr.mxu0 0.0
        %1438 = vmatpush1.msra.mxu0 0.0
        %1439 = vmatprep.subr.mxu0 0.0
        %1440 = vmatpush1.msra.mxu0 0.0
        %1441 = vmatprep.subr.mxu0 0.0
        %1442 = vmatpush1.msra.mxu0 0.0
        %1443 = vmatprep.subr.mxu0 0.0
        %1444 = vmatpush1.msra.mxu0 0.0
        %1445 = vmatprep.subr.mxu0 0.0
        %1446 = vmatpush1.msra.mxu0 0.0
        %1447 = vmatprep.subr.mxu0 0.0
        %1448 = vmatpush1.msra.mxu0 0.0
        %1449 = vmatprep.subr.mxu0 0.0
        %1450 = vmatpush1.msra.mxu0 0.0
        %1451 = vmatprep.subr.mxu0 0.0
        %1452 = vmatpush1.msra.mxu0 0.0
        %1453 = vmatprep.subr.mxu0 0.0
        %1454 = vmatpush1.msra.mxu0 0.0
        %1455 = vmatprep.subr.mxu0 0.0
        %1456 = vmatpush1.msra.mxu0 0.0
        %1457 = vmatprep.subr.mxu0 0.0
        %1458 = vmatpush1.msra.mxu0 0.0
        %1459 = vmatprep.subr.mxu0 0.0
        %1460 = vmatpush1.msra.mxu0 0.0
        %1461 = vmatprep.subr.mxu0 0.0
        %1462 = vmatpush1.msra.mxu0 0.0
        %1463 = vmatprep.subr.mxu0 %v1427
        %1464 = vmatpush1.msra.mxu0 %v1426
        %1465 = vmatprep.subr.mxu0 0.0
        %1466 = vmatpush2.msra.mxu0 0.0
        %1467 = vmatprep.subr.mxu0 0.0
        %1468 = vmatpush2.msra.mxu0 0.0
        %1469 = vmatprep.subr.mxu0 0.0
        %1470 = vmatpush2.msra.mxu0 0.0
        %1471 = vmatprep.subr.mxu0 0.0
        %1472 = vmatpush2.msra.mxu0 0.0
        %1473 = vmatprep.subr.mxu0 0.0
        %1474 = vmatpush2.msra.mxu0 0.0
        %1475 = vmatprep.subr.mxu0 0.0
        %1476 = vmatpush2.msra.mxu0 0.0
        %1477 = vmatprep.subr.mxu0 0.0
        %1478 = vmatpush2.msra.mxu0 0.0
        %1479 = vmatprep.subr.mxu0 0.0
        %1480 = vmatpush2.msra.mxu0 0.0
        %1481 = vmatprep.subr.mxu0 0.0
        %1482 = vmatpush2.msra.mxu0 0.0
        %1483 = vmatprep.subr.mxu0 0.0
        %1484 = vmatpush2.msra.mxu0 0.0
        %1485 = vmatprep.subr.mxu0 0.0
        %1486 = vmatpush2.msra.mxu0 0.0
        %1487 = vmatprep.subr.mxu0 0.0
        %1488 = vmatpush2.msra.mxu0 0.0
        %1489 = vmatprep.subr.mxu0 0.0
        %1490 = vmatpush2.msra.mxu0 0.0
        %1491 = vmatprep.subr.mxu0 0.0
        %1492 = vmatpush2.msra.mxu0 0.0
        %1493 = vmatprep.subr.mxu0 0.0
        %1494 = vmatpush2.msra.mxu0 0.0
        %1495 = vmatprep.subr.mxu0 0.0
        %1496 = vmatpush2.msra.mxu0 0.0
        %1497 = vmatprep.mubr.f32.mxu0 0.0
        %1498 = vmatmul.mubr.f32.gmra.mxu0 %v1431
        %v1499 = vpop.f32.mrf.mxu0
        %v1500 = vadd.f32 0.0, %v1499
        %v1501 = vpop.f32.mrf.mxu0
        %v1502 = vadd.f32 0.0, %v1501
        %1503 = vdwg.mxu0
        %v1504 = vadd.f32 %v1416, %v1500
        %v1505 = vadd.f32 %v1418, %v1502
        %1506 = vrot.lane.b32.xlu0 %v1250, 1
        %v1507 = vpop.permute.xlu0 %1506
        %1508 = vrot.lane.b32.xlu0 %v1251, 1
        %v1509 = vpop.permute.xlu0 %1508
        %v1510 = vsel %vm607, %v1507, %v1509
        %v1511 = vsel %vm607, %v1509, %v1507
        %v1512 = vsel %vm626, %v1511, 0.0
        %v1513 = vsel %vm627, %v1510, 0.0
        %s1514 = scalar_lea.vmem %s4, 24
        %v1515 = vld [vmem:[%s1514] sm:$0xff]
        %v1517 = vsel %vm1271, %v1515, 0
        %1519 = vmatprep.subr.mxu0 0.0
        %1520 = vmatpush1.msra.mxu0 0.0
        %1521 = vmatprep.subr.mxu0 0.0
        %1522 = vmatpush1.msra.mxu0 0.0
        %1523 = vmatprep.subr.mxu0 0.0
        %1524 = vmatpush1.msra.mxu0 0.0
        %1525 = vmatprep.subr.mxu0 0.0
        %1526 = vmatpush1.msra.mxu0 0.0
        %1527 = vmatprep.subr.mxu0 0.0
        %1528 = vmatpush1.msra.mxu0 0.0
        %1529 = vmatprep.subr.mxu0 0.0
        %1530 = vmatpush1.msra.mxu0 0.0
        %1531 = vmatprep.subr.mxu0 0.0
        %1532 = vmatpush1.msra.mxu0 0.0
        %1533 = vmatprep.subr.mxu0 0.0
        %1534 = vmatpush1.msra.mxu0 0.0
        %1535 = vmatprep.subr.mxu0 0.0
        %1536 = vmatpush1.msra.mxu0 0.0
        %1537 = vmatprep.subr.mxu0 0.0
        %1538 = vmatpush1.msra.mxu0 0.0
        %1539 = vmatprep.subr.mxu0 0.0
        %1540 = vmatpush1.msra.mxu0 0.0
        %1541 = vmatprep.subr.mxu0 0.0
        %1542 = vmatpush1.msra.mxu0 0.0
        %1543 = vmatprep.subr.mxu0 0.0
        %1544 = vmatpush1.msra.mxu0 0.0
        %1545 = vmatprep.subr.mxu0 0.0
        %1546 = vmatpush1.msra.mxu0 0.0
        %1547 = vmatprep.subr.mxu0 0.0
        %1548 = vmatpush1.msra.mxu0 0.0
        %1549 = vmatprep.subr.mxu0 %v1513
        %1550 = vmatpush1.msra.mxu0 %v1512
        %1551 = vmatprep.subr.mxu0 0.0
        %1552 = vmatpush2.msra.mxu0 0.0
        %1553 = vmatprep.subr.mxu0 0.0
        %1554 = vmatpush2.msra.mxu0 0.0
        %1555 = vmatprep.subr.mxu0 0.0
        %1556 = vmatpush2.msra.mxu0 0.0
        %1557 = vmatprep.subr.mxu0 0.0
        %1558 = vmatpush2.msra.mxu0 0.0
        %1559 = vmatprep.subr.mxu0 0.0
        %1560 = vmatpush2.msra.mxu0 0.0
        %1561 = vmatprep.subr.mxu0 0.0
        %1562 = vmatpush2.msra.mxu0 0.0
        %1563 = vmatprep.subr.mxu0 0.0
        %1564 = vmatpush2.msra.mxu0 0.0
        %1565 = vmatprep.subr.mxu0 0.0
        %1566 = vmatpush2.msra.mxu0 0.0
        %1567 = vmatprep.subr.mxu0 0.0
        %1568 = vmatpush2.msra.mxu0 0.0
        %1569 = vmatprep.subr.mxu0 0.0
        %1570 = vmatpush2.msra.mxu0 0.0
        %1571 = vmatprep.subr.mxu0 0.0
        %1572 = vmatpush2.msra.mxu0 0.0
        %1573 = vmatprep.subr.mxu0 0.0
        %1574 = vmatpush2.msra.mxu0 0.0
        %1575 = vmatprep.subr.mxu0 0.0
        %1576 = vmatpush2.msra.mxu0 0.0
        %1577 = vmatprep.subr.mxu0 0.0
        %1578 = vmatpush2.msra.mxu0 0.0
        %1579 = vmatprep.subr.mxu0 0.0
        %1580 = vmatpush2.msra.mxu0 0.0
        %1581 = vmatprep.subr.mxu0 0.0
        %1582 = vmatpush2.msra.mxu0 0.0
        %1583 = vmatprep.mubr.f32.mxu0 0.0
        %1584 = vmatmul.mubr.f32.gmra.mxu0 %v1517
        %v1585 = vpop.f32.mrf.mxu0
        %v1586 = vadd.f32 0.0, %v1585
        %v1587 = vpop.f32.mrf.mxu0
        %v1588 = vadd.f32 0.0, %v1587
        %1589 = vdwg.mxu0
        %v1590 = vadd.f32 %v1504, %v1586
        %v1591 = vadd.f32 %v1505, %v1588
        %s1592 = scalar_lea.vmem %s4, 32
        %v1593 = vld [vmem:[%s1592] sm:$0xff]
        %v1595 = vsel %vm1271, %v1593, 0
        %1597 = vmatprep.subr.mxu0 0.0
        %1598 = vmatpush1.msra.mxu0 0.0
        %1599 = vmatprep.subr.mxu0 0.0
        %1600 = vmatpush1.msra.mxu0 0.0
        %1601 = vmatprep.subr.mxu0 0.0
        %1602 = vmatpush1.msra.mxu0 0.0
        %1603 = vmatprep.subr.mxu0 0.0
        %1604 = vmatpush1.msra.mxu0 0.0
        %1605 = vmatprep.subr.mxu0 0.0
        %1606 = vmatpush1.msra.mxu0 0.0
        %1607 = vmatprep.subr.mxu0 0.0
        %1608 = vmatpush1.msra.mxu0 0.0
        %1609 = vmatprep.subr.mxu0 0.0
        %1610 = vmatpush1.msra.mxu0 0.0
        %1611 = vmatprep.subr.mxu0 0.0
        %1612 = vmatpush1.msra.mxu0 0.0
        %1613 = vmatprep.subr.mxu0 0.0
        %1614 = vmatpush1.msra.mxu0 0.0
        %1615 = vmatprep.subr.mxu0 0.0
        %1616 = vmatpush1.msra.mxu0 0.0
        %1617 = vmatprep.subr.mxu0 0.0
        %1618 = vmatpush1.msra.mxu0 0.0
        %1619 = vmatprep.subr.mxu0 0.0
        %1620 = vmatpush1.msra.mxu0 0.0
        %1621 = vmatprep.subr.mxu0 0.0
        %1622 = vmatpush1.msra.mxu0 0.0
        %1623 = vmatprep.subr.mxu0 0.0
        %1624 = vmatpush1.msra.mxu0 0.0
        %1625 = vmatprep.subr.mxu0 0.0
        %1626 = vmatpush1.msra.mxu0 0.0
        %1627 = vmatprep.subr.mxu0 %v1251
        %1628 = vmatpush1.msra.mxu0 %v1250
        %1629 = vmatprep.subr.mxu0 0.0
        %1630 = vmatpush2.msra.mxu0 0.0
        %1631 = vmatprep.subr.mxu0 0.0
        %1632 = vmatpush2.msra.mxu0 0.0
        %1633 = vmatprep.subr.mxu0 0.0
        %1634 = vmatpush2.msra.mxu0 0.0
        %1635 = vmatprep.subr.mxu0 0.0
        %1636 = vmatpush2.msra.mxu0 0.0
        %1637 = vmatprep.subr.mxu0 0.0
        %1638 = vmatpush2.msra.mxu0 0.0
        %1639 = vmatprep.subr.mxu0 0.0
        %1640 = vmatpush2.msra.mxu0 0.0
        %1641 = vmatprep.subr.mxu0 0.0
        %1642 = vmatpush2.msra.mxu0 0.0
        %1643 = vmatprep.subr.mxu0 0.0
        %1644 = vmatpush2.msra.mxu0 0.0
        %1645 = vmatprep.subr.mxu0 0.0
        %1646 = vmatpush2.msra.mxu0 0.0
        %1647 = vmatprep.subr.mxu0 0.0
        %1648 = vmatpush2.msra.mxu0 0.0
        %1649 = vmatprep.subr.mxu0 0.0
        %1650 = vmatpush2.msra.mxu0 0.0
        %1651 = vmatprep.subr.mxu0 0.0
        %1652 = vmatpush2.msra.mxu0 0.0
        %1653 = vmatprep.subr.mxu0 0.0
        %1654 = vmatpush2.msra.mxu0 0.0
        %1655 = vmatprep.subr.mxu0 0.0
        %1656 = vmatpush2.msra.mxu0 0.0
        %1657 = vmatprep.subr.mxu0 0.0
        %1658 = vmatpush2.msra.mxu0 0.0
        %1659 = vmatprep.subr.mxu0 0.0
        %1660 = vmatpush2.msra.mxu0 0.0
        %1661 = vmatprep.mubr.f32.mxu0 0.0
        %1662 = vmatmul.mubr.f32.gmra.mxu0 %v1595
        %v1663 = vpop.f32.mrf.mxu0
        %v1664 = vadd.f32 0.0, %v1663
        %v1665 = vpop.f32.mrf.mxu0
        %v1666 = vadd.f32 0.0, %v1665
        %1667 = vdwg.mxu0
        %v1668 = vadd.f32 %v1590, %v1664
        %v1669 = vadd.f32 %v1591, %v1666
        %1670 = vrot.lane.b32.xlu0 %v1250, 127
        %v1671 = vpop.permute.xlu0 %1670
        %1672 = vrot.lane.b32.xlu0 %v1251, 127
        %v1673 = vpop.permute.xlu0 %1672
        %v1674 = vsel %vm800, %v1671, %v1673
        %v1675 = vsel %vm800, %v1673, %v1671
        %v1676 = vsel %vm819, %v1674, 0.0
        %v1677 = vsel %vm820, %v1675, 0.0
        %s1678 = scalar_lea.vmem %s4, 40
        %v1679 = vld [vmem:[%s1678] sm:$0xff]
        %v1681 = vsel %vm1271, %v1679, 0
        %1683 = vmatprep.subr.mxu0 0.0
        %1684 = vmatpush1.msra.mxu0 0.0
        %1685 = vmatprep.subr.mxu0 0.0
        %1686 = vmatpush1.msra.mxu0 0.0
        %1687 = vmatprep.subr.mxu0 0.0
        %1688 = vmatpush1.msra.mxu0 0.0
        %1689 = vmatprep.subr.mxu0 0.0
        %1690 = vmatpush1.msra.mxu0 0.0
        %1691 = vmatprep.subr.mxu0 0.0
        %1692 = vmatpush1.msra.mxu0 0.0
        %1693 = vmatprep.subr.mxu0 0.0
        %1694 = vmatpush1.msra.mxu0 0.0
        %1695 = vmatprep.subr.mxu0 0.0
        %1696 = vmatpush1.msra.mxu0 0.0
        %1697 = vmatprep.subr.mxu0 0.0
        %1698 = vmatpush1.msra.mxu0 0.0
        %1699 = vmatprep.subr.mxu0 0.0
        %1700 = vmatpush1.msra.mxu0 0.0
        %1701 = vmatprep.subr.mxu0 0.0
        %1702 = vmatpush1.msra.mxu0 0.0
        %1703 = vmatprep.subr.mxu0 0.0
        %1704 = vmatpush1.msra.mxu0 0.0
        %1705 = vmatprep.subr.mxu0 0.0
        %1706 = vmatpush1.msra.mxu0 0.0
        %1707 = vmatprep.subr.mxu0 0.0
        %1708 = vmatpush1.msra.mxu0 0.0
        %1709 = vmatprep.subr.mxu0 0.0
        %1710 = vmatpush1.msra.mxu0 0.0
        %1711 = vmatprep.subr.mxu0 0.0
        %1712 = vmatpush1.msra.mxu0 0.0
        %1713 = vmatprep.subr.mxu0 %v1677
        %1714 = vmatpush1.msra.mxu0 %v1676
        %1715 = vmatprep.subr.mxu0 0.0
        %1716 = vmatpush2.msra.mxu0 0.0
        %1717 = vmatprep.subr.mxu0 0.0
        %1718 = vmatpush2.msra.mxu0 0.0
        %1719 = vmatprep.subr.mxu0 0.0
        %1720 = vmatpush2.msra.mxu0 0.0
        %1721 = vmatprep.subr.mxu0 0.0
        %1722 = vmatpush2.msra.mxu0 0.0
        %1723 = vmatprep.subr.mxu0 0.0
        %1724 = vmatpush2.msra.mxu0 0.0
        %1725 = vmatprep.subr.mxu0 0.0
        %1726 = vmatpush2.msra.mxu0 0.0
        %1727 = vmatprep.subr.mxu0 0.0
        %1728 = vmatpush2.msra.mxu0 0.0
        %1729 = vmatprep.subr.mxu0 0.0
        %1730 = vmatpush2.msra.mxu0 0.0
        %1731 = vmatprep.subr.mxu0 0.0
        %1732 = vmatpush2.msra.mxu0 0.0
        %1733 = vmatprep.subr.mxu0 0.0
        %1734 = vmatpush2.msra.mxu0 0.0
        %1735 = vmatprep.subr.mxu0 0.0
        %1736 = vmatpush2.msra.mxu0 0.0
        %1737 = vmatprep.subr.mxu0 0.0
        %1738 = vmatpush2.msra.mxu0 0.0
        %1739 = vmatprep.subr.mxu0 0.0
        %1740 = vmatpush2.msra.mxu0 0.0
        %1741 = vmatprep.subr.mxu0 0.0
        %1742 = vmatpush2.msra.mxu0 0.0
        %1743 = vmatprep.subr.mxu0 0.0
        %1744 = vmatpush2.msra.mxu0 0.0
        %1745 = vmatprep.subr.mxu0 0.0
        %1746 = vmatpush2.msra.mxu0 0.0
        %1747 = vmatprep.mubr.f32.mxu0 0.0
        %1748 = vmatmul.mubr.f32.gmra.mxu0 %v1681
        %v1749 = vpop.f32.mrf.mxu0
        %v1750 = vadd.f32 0.0, %v1749
        %v1751 = vpop.f32.mrf.mxu0
        %v1752 = vadd.f32 0.0, %v1751
        %1753 = vdwg.mxu0
        %v1754 = vadd.f32 %v1668, %v1750
        %v1755 = vadd.f32 %v1669, %v1752
        %1756 = vrot.lane.b32.xlu0 %v1250, 113
        %v1757 = vpop.permute.xlu0 %1756
        %1758 = vrot.lane.b32.xlu0 %v1251, 113
        %v1759 = vpop.permute.xlu0 %1758
        %v1760 = vsel %vm911, %v1757, %v1759
        %v1761 = vsel %vm911, %v1759, %v1757
        %v1762 = vsel %vm931, %v1760, 0.0
        %v1763 = vsel %vm932, %v1761, 0.0
        %s1764 = scalar_lea.vmem %s4, 48
        %v1765 = vld [vmem:[%s1764] sm:$0xff]
        %v1767 = vsel %vm1271, %v1765, 0
        %1769 = vmatprep.subr.mxu0 0.0
        %1770 = vmatpush1.msra.mxu0 0.0
        %1771 = vmatprep.subr.mxu0 0.0
        %1772 = vmatpush1.msra.mxu0 0.0
        %1773 = vmatprep.subr.mxu0 0.0
        %1774 = vmatpush1.msra.mxu0 0.0
        %1775 = vmatprep.subr.mxu0 0.0
        %1776 = vmatpush1.msra.mxu0 0.0
        %1777 = vmatprep.subr.mxu0 0.0
        %1778 = vmatpush1.msra.mxu0 0.0
        %1779 = vmatprep.subr.mxu0 0.0
        %1780 = vmatpush1.msra.mxu0 0.0
        %1781 = vmatprep.subr.mxu0 0.0
        %1782 = vmatpush1.msra.mxu0 0.0
        %1783 = vmatprep.subr.mxu0 0.0
        %1784 = vmatpush1.msra.mxu0 0.0
        %1785 = vmatprep.subr.mxu0 0.0
        %1786 = vmatpush1.msra.mxu0 0.0
        %1787 = vmatprep.subr.mxu0 0.0
        %1788 = vmatpush1.msra.mxu0 0.0
        %1789 = vmatprep.subr.mxu0 0.0
        %1790 = vmatpush1.msra.mxu0 0.0
        %1791 = vmatprep.subr.mxu0 0.0
        %1792 = vmatpush1.msra.mxu0 0.0
        %1793 = vmatprep.subr.mxu0 0.0
        %1794 = vmatpush1.msra.mxu0 0.0
        %1795 = vmatprep.subr.mxu0 0.0
        %1796 = vmatpush1.msra.mxu0 0.0
        %1797 = vmatprep.subr.mxu0 0.0
        %1798 = vmatpush1.msra.mxu0 0.0
        %1799 = vmatprep.subr.mxu0 %v1763
        %1800 = vmatpush1.msra.mxu0 %v1762
        %1801 = vmatprep.subr.mxu0 0.0
        %1802 = vmatpush2.msra.mxu0 0.0
        %1803 = vmatprep.subr.mxu0 0.0
        %1804 = vmatpush2.msra.mxu0 0.0
        %1805 = vmatprep.subr.mxu0 0.0
        %1806 = vmatpush2.msra.mxu0 0.0
        %1807 = vmatprep.subr.mxu0 0.0
        %1808 = vmatpush2.msra.mxu0 0.0
        %1809 = vmatprep.subr.mxu0 0.0
        %1810 = vmatpush2.msra.mxu0 0.0
        %1811 = vmatprep.subr.mxu0 0.0
        %1812 = vmatpush2.msra.mxu0 0.0
        %1813 = vmatprep.subr.mxu0 0.0
        %1814 = vmatpush2.msra.mxu0 0.0
        %1815 = vmatprep.subr.mxu0 0.0
        %1816 = vmatpush2.msra.mxu0 0.0
        %1817 = vmatprep.subr.mxu0 0.0
        %1818 = vmatpush2.msra.mxu0 0.0
        %1819 = vmatprep.subr.mxu0 0.0
        %1820 = vmatpush2.msra.mxu0 0.0
        %1821 = vmatprep.subr.mxu0 0.0
        %1822 = vmatpush2.msra.mxu0 0.0
        %1823 = vmatprep.subr.mxu0 0.0
        %1824 = vmatpush2.msra.mxu0 0.0
        %1825 = vmatprep.subr.mxu0 0.0
        %1826 = vmatpush2.msra.mxu0 0.0
        %1827 = vmatprep.subr.mxu0 0.0
        %1828 = vmatpush2.msra.mxu0 0.0
        %1829 = vmatprep.subr.mxu0 0.0
        %1830 = vmatpush2.msra.mxu0 0.0
        %1831 = vmatprep.subr.mxu0 0.0
        %1832 = vmatpush2.msra.mxu0 0.0
        %1833 = vmatprep.mubr.f32.mxu0 0.0
        %1834 = vmatmul.mubr.f32.gmra.mxu0 %v1767
        %v1835 = vpop.f32.mrf.mxu0
        %v1836 = vadd.f32 0.0, %v1835
        %v1837 = vpop.f32.mrf.mxu0
        %v1838 = vadd.f32 0.0, %v1837
        %1839 = vdwg.mxu0
        %v1840 = vadd.f32 %v1754, %v1836
        %v1841 = vadd.f32 %v1755, %v1838
        %1842 = vrot.lane.b32.xlu0 %v1250, 112
        %v1843 = vpop.permute.xlu0 %1842
        %1844 = vrot.lane.b32.xlu0 %v1251, 112
        %v1845 = vpop.permute.xlu0 %1844
        %v1846 = vsel %vm1023, %v1843, %v1845
        %v1847 = vsel %vm1023, %v1845, %v1843
        %v1848 = vsel %vm1042, %v1846, 0.0
        %v1849 = vsel %vm1043, %v1847, 0.0
        %s1850 = scalar_lea.vmem %s4, 56
        %v1851 = vld [vmem:[%s1850] sm:$0xff]
        %v1853 = vsel %vm1271, %v1851, 0
        %1855 = vmatprep.subr.mxu0 0.0
        %1856 = vmatpush1.msra.mxu0 0.0
        %1857 = vmatprep.subr.mxu0 0.0
        %1858 = vmatpush1.msra.mxu0 0.0
        %1859 = vmatprep.subr.mxu0 0.0
        %1860 = vmatpush1.msra.mxu0 0.0
        %1861 = vmatprep.subr.mxu0 0.0
        %1862 = vmatpush1.msra.mxu0 0.0
        %1863 = vmatprep.subr.mxu0 0.0
        %1864 = vmatpush1.msra.mxu0 0.0
        %1865 = vmatprep.subr.mxu0 0.0
        %1866 = vmatpush1.msra.mxu0 0.0
        %1867 = vmatprep.subr.mxu0 0.0
        %1868 = vmatpush1.msra.mxu0 0.0
        %1869 = vmatprep.subr.mxu0 0.0
        %1870 = vmatpush1.msra.mxu0 0.0
        %1871 = vmatprep.subr.mxu0 0.0
        %1872 = vmatpush1.msra.mxu0 0.0
        %1873 = vmatprep.subr.mxu0 0.0
        %1874 = vmatpush1.msra.mxu0 0.0
        %1875 = vmatprep.subr.mxu0 0.0
        %1876 = vmatpush1.msra.mxu0 0.0
        %1877 = vmatprep.subr.mxu0 0.0
        %1878 = vmatpush1.msra.mxu0 0.0
        %1879 = vmatprep.subr.mxu0 0.0
        %1880 = vmatpush1.msra.mxu0 0.0
        %1881 = vmatprep.subr.mxu0 0.0
        %1882 = vmatpush1.msra.mxu0 0.0
        %1883 = vmatprep.subr.mxu0 0.0
        %1884 = vmatpush1.msra.mxu0 0.0
        %1885 = vmatprep.subr.mxu0 %v1849
        %1886 = vmatpush1.msra.mxu0 %v1848
        %1887 = vmatprep.subr.mxu0 0.0
        %1888 = vmatpush2.msra.mxu0 0.0
        %1889 = vmatprep.subr.mxu0 0.0
        %1890 = vmatpush2.msra.mxu0 0.0
        %1891 = vmatprep.subr.mxu0 0.0
        %1892 = vmatpush2.msra.mxu0 0.0
        %1893 = vmatprep.subr.mxu0 0.0
        %1894 = vmatpush2.msra.mxu0 0.0
        %1895 = vmatprep.subr.mxu0 0.0
        %1896 = vmatpush2.msra.mxu0 0.0
        %1897 = vmatprep.subr.mxu0 0.0
        %1898 = vmatpush2.msra.mxu0 0.0
        %1899 = vmatprep.subr.mxu0 0.0
        %1900 = vmatpush2.msra.mxu0 0.0
        %1901 = vmatprep.subr.mxu0 0.0
        %1902 = vmatpush2.msra.mxu0 0.0
        %1903 = vmatprep.subr.mxu0 0.0
        %1904 = vmatpush2.msra.mxu0 0.0
        %1905 = vmatprep.subr.mxu0 0.0
        %1906 = vmatpush2.msra.mxu0 0.0
        %1907 = vmatprep.subr.mxu0 0.0
        %1908 = vmatpush2.msra.mxu0 0.0
        %1909 = vmatprep.subr.mxu0 0.0
        %1910 = vmatpush2.msra.mxu0 0.0
        %1911 = vmatprep.subr.mxu0 0.0
        %1912 = vmatpush2.msra.mxu0 0.0
        %1913 = vmatprep.subr.mxu0 0.0
        %1914 = vmatpush2.msra.mxu0 0.0
        %1915 = vmatprep.subr.mxu0 0.0
        %1916 = vmatpush2.msra.mxu0 0.0
        %1917 = vmatprep.subr.mxu0 0.0
        %1918 = vmatpush2.msra.mxu0 0.0
        %1919 = vmatprep.mubr.f32.mxu0 0.0
        %1920 = vmatmul.mubr.f32.gmra.mxu0 %v1853
        %v1921 = vpop.f32.mrf.mxu0
        %v1922 = vadd.f32 0.0, %v1921
        %v1923 = vpop.f32.mrf.mxu0
        %v1924 = vadd.f32 0.0, %v1923
        %1925 = vdwg.mxu0
        %v1926 = vadd.f32 %v1840, %v1922
        %v1927 = vadd.f32 %v1841, %v1924
        %1928 = vrot.lane.b32.xlu0 %v1250, 111
        %v1929 = vpop.permute.xlu0 %1928
        %1930 = vrot.lane.b32.xlu0 %v1251, 111
        %v1931 = vpop.permute.xlu0 %1930
        %v1932 = vsel %vm1134, %v1929, %v1931
        %v1933 = vsel %vm1134, %v1931, %v1929
        %v1934 = vsel %vm1154, %v1932, 0.0
        %v1935 = vsel %vm1155, %v1933, 0.0
        %s1936 = scalar_lea.vmem %s4, 64
        %v1937 = vld [vmem:[%s1936] sm:$0xff]
        %v1939 = vsel %vm1271, %v1937, 0
        %1941 = vmatprep.subr.mxu0 0.0
        %1942 = vmatpush1.msra.mxu0 0.0
        %1943 = vmatprep.subr.mxu0 0.0
        %1944 = vmatpush1.msra.mxu0 0.0
        %1945 = vmatprep.subr.mxu0 0.0
        %1946 = vmatpush1.msra.mxu0 0.0
        %1947 = vmatprep.subr.mxu0 0.0
        %1948 = vmatpush1.msra.mxu0 0.0
        %1949 = vmatprep.subr.mxu0 0.0
        %1950 = vmatpush1.msra.mxu0 0.0
        %1951 = vmatprep.subr.mxu0 0.0
        %1952 = vmatpush1.msra.mxu0 0.0
        %1953 = vmatprep.subr.mxu0 0.0
        %1954 = vmatpush1.msra.mxu0 0.0
        %1955 = vmatprep.subr.mxu0 0.0
        %1956 = vmatpush1.msra.mxu0 0.0
        %1957 = vmatprep.subr.mxu0 0.0
        %1958 = vmatpush1.msra.mxu0 0.0
        %1959 = vmatprep.subr.mxu0 0.0
        %1960 = vmatpush1.msra.mxu0 0.0
        %1961 = vmatprep.subr.mxu0 0.0
        %1962 = vmatpush1.msra.mxu0 0.0
        %1963 = vmatprep.subr.mxu0 0.0
        %1964 = vmatpush1.msra.mxu0 0.0
        %1965 = vmatprep.subr.mxu0 0.0
        %1966 = vmatpush1.msra.mxu0 0.0
        %1967 = vmatprep.subr.mxu0 0.0
        %1968 = vmatpush1.msra.mxu0 0.0
        %1969 = vmatprep.subr.mxu0 0.0
        %1970 = vmatpush1.msra.mxu0 0.0
        %1971 = vmatprep.subr.mxu0 %v1935
        %1972 = vmatpush1.msra.mxu0 %v1934
        %1973 = vmatprep.subr.mxu0 0.0
        %1974 = vmatpush2.msra.mxu0 0.0
        %1975 = vmatprep.subr.mxu0 0.0
        %1976 = vmatpush2.msra.mxu0 0.0
        %1977 = vmatprep.subr.mxu0 0.0
        %1978 = vmatpush2.msra.mxu0 0.0
        %1979 = vmatprep.subr.mxu0 0.0
        %1980 = vmatpush2.msra.mxu0 0.0
        %1981 = vmatprep.subr.mxu0 0.0
        %1982 = vmatpush2.msra.mxu0 0.0
        %1983 = vmatprep.subr.mxu0 0.0
        %1984 = vmatpush2.msra.mxu0 0.0
        %1985 = vmatprep.subr.mxu0 0.0
        %1986 = vmatpush2.msra.mxu0 0.0
        %1987 = vmatprep.subr.mxu0 0.0
        %1988 = vmatpush2.msra.mxu0 0.0
        %1989 = vmatprep.subr.mxu0 0.0
        %1990 = vmatpush2.msra.mxu0 0.0
        %1991 = vmatprep.subr.mxu0 0.0
        %1992 = vmatpush2.msra.mxu0 0.0
        %1993 = vmatprep.subr.mxu0 0.0
        %1994 = vmatpush2.msra.mxu0 0.0
        %1995 = vmatprep.subr.mxu0 0.0
        %1996 = vmatpush2.msra.mxu0 0.0
        %1997 = vmatprep.subr.mxu0 0.0
        %1998 = vmatpush2.msra.mxu0 0.0
        %1999 = vmatprep.subr.mxu0 0.0
        %2000 = vmatpush2.msra.mxu0 0.0
        %2001 = vmatprep.subr.mxu0 0.0
        %2002 = vmatpush2.msra.mxu0 0.0
        %2003 = vmatprep.subr.mxu0 0.0
        %2004 = vmatpush2.msra.mxu0 0.0
        %2005 = vmatprep.mubr.f32.mxu0 0.0
        %2006 = vmatmul.mubr.f32.gmra.mxu0 %v1939
        %v2007 = vpop.f32.mrf.mxu0
        %v2008 = vadd.f32 0.0, %v2007
        %v2009 = vpop.f32.mrf.mxu0
        %v2010 = vadd.f32 0.0, %v2009
        %2011 = vdwg.mxu0
        %v2012 = vadd.f32 %v1926, %v2008
        %v2013 = vadd.f32 %v1927, %v2010
        %v2014 = vld [vmem:[%s5] sm:$0xff]
        %2016 = vset.pattern.permute.xlu0 0
        %2017 = vperm.xlu0 %2016, %v2014
        %v2018 = vpop.permute.xlu0 %2017
        %v2020 = vadd.f32 %v2012, %v2018
        %v2021 = vadd.f32 %v2013, %v2018
        %v2022 = vmax.f32 %v2020, 0.0
        %v2023 = vmax.f32 %v2021, 0.0
        %2024 = vst [vmem:[%s244] sm:$0xff] %v2022
        %2025 = vst [vmem:[%s244 + $0x8] sm:$0xff] %v2023
        %s2026 = sand.u32 %s159, 1
        %s2027 = scalar_lea.sflag [#allocation3], %s2026
        %s2028 = sand.u32 %s159, 1
        %s2029 = smul.addr %s2028, 16
        %s2030 = scalar_lea.vmem [#allocation2], %s2029
        // Predicated region
        $region45: #{tpu_custom_call.1} parent=43 // pred_check
          %p2031 = pneg %p169
        $region46: #{tpu_custom_call.1} parent=43 // pred_check_branch
          %2033 = sbr.rel (%p2031) target = $region48
        $region47: #{tpu_custom_call.1} parent=43 // pred_region
          %s2035 = ssub.s32 256, 256
          %2036 = vsyncadd %s2027, %s2035
          %s2037 = smul.addr %s20, 2
          %s2038 = smul.addr %s2037, 128
          %s2039 = scalar_lea.hbm %s6, %s2038
          %s2041 = sshll.u32 %s2030, 4
          %s2042 = int_to_ptr.vmem [resolvable:$true] %s2041
          %2044 = dma.vmem_to_hbm [thread:$0]  %s2042, 256, %s2039, %s2027
        $region48: #{tpu_custom_call.1} parent=43 // pred_fallthru
          _
      $region44: #{tpu_custom_call.1} parent=5 // pred_fallthru
        _
      %p2045 = scmp.le.s32.totalorder 2, %s15
      // Predicated region
      $region49: #{tpu_custom_call.1} parent=5 // pred_check
        %p2046 = pneg %p2045
      $region50: #{tpu_custom_call.1} parent=5 // pred_check_branch
        %2048 = sbr.rel (%p2046) target = $region52
      $region51: #{tpu_custom_call.1} parent=5 // pred_region
        %s2049 = ssub.s32 %s15, 2
        // Predicated region
        $region53: #{tpu_custom_call.1} parent=51 // pred_check
          %p2050 = pneg %p175
        $region54: #{tpu_custom_call.1} parent=51 // pred_check_branch
          %2052 = sbr.rel (%p2050) target = $region56
        $region55: #{tpu_custom_call.1} parent=51 // pred_region
          %s2053 = sand.u32 %s160, 1
          %s2054 = scalar_lea.sflag [#allocation3], %s2053
          %s2055 = sand.u32 %s160, 1
          %s2056 = smul.addr %s2055, 16
          %s2057 = scalar_lea.vmem [#allocation2], %s2056
          %2058 = dma.done %s2054, 256
        $region56: #{tpu_custom_call.1} parent=51 // pred_fallthru
          _
      $region52: #{tpu_custom_call.1} parent=5 // pred_fallthru
        _
    $region6: #{tpu_custom_call.1} parent=1 // loop_footer
      %s19 = sadd.s32 1, %s15
    $region7: #{tpu_custom_call.1} parent=1 // loop_footer_branch
      %14 = sbr.rel target = $region3
    $region8: #{tpu_custom_call.1} parent=1 // loop_exit
      _
    %2059 = vsyncpa [#allocation3], 1
    %s2060 = scalar_lea.sflag [#allocation3], 1
    %2061 = vsyncpa %s2060, 1

</llo_original>
